<compile_context>
chip_gen: v7x
topology: tpu7x:2x2x1
jax: 0.10.0
libtpu: 0.0.40
codegen_flags: <defaults>
</compile_context>

<pallas_src>
import functools

import jax
import jax.numpy as jnp
from jax import lax
from jax.experimental import pallas as pl
from jax.experimental.pallas import tpu as pltpu


def gru_kernel(x_ref, w_ih_ref, w_hh_ref, bp_ref, bn_ref, h0_ref,
               out_ref, hT_ref, ih_scr, h_scr, *, unroll):
    # x_ref:    (BB, TC, D_in)
    # w_ih_ref: (BB, D_in, 3H)   gate order along the 3H axis: r, z, n
    # w_hh_ref: (BB, H, 3H)
    # bp_ref:   (BB, 1, 3H) f32  [b_ih_r + b_hh_r, b_ih_z + b_hh_z, b_ih_n]
    # bn_ref:   (BB, 1, H)  f32  b_hh_n (kept inside r * (.))
    # h0_ref:   (BB, 1, H)
    # out_ref:  (BB, TC, H)      hT_ref: (BB, 1, H)
    # ih_scr:   VMEM (BB, TC, 3H) f32 -- hoisted input projection (this chunk)
    # h_scr:    VMEM (BB, H) f32      -- hidden state carried across time chunks
    BB, TC, _ = x_ref.shape
    H = bn_ref.shape[-1]
    num_chunks = TC // unroll

    # ---- Hoisted input projection (no recurrent dependency): one fused
    #      (TC, D_in) @ (D_in, 3H) matmul per batch; r/z (+ n-input) biases
    #      folded in once; dense per-batch store into the VMEM scratch. ----
    for b in range(BB):
        ih_scr[b] = (jnp.dot(x_ref[b], w_ih_ref[b],
                             preferred_element_type=jnp.float32)
                     + bp_ref[b])                                   # (TC, 3H)

    # ---- Seed the hidden-state carry at the first time-chunk of this
    #      batch block. ----
    @pl.when(pl.program_id(1) == 0)
    def _():
        h_scr[...] = jnp.concatenate(
            [h0_ref[b] for b in range(BB)], axis=0).astype(jnp.float32)

    # Packed (BB, H) n-gate hidden bias (loop-invariant, tiny).
    b_hn = jnp.concatenate(
        [bn_ref[b] for b in range(BB)], axis=0).astype(jnp.float32)

    def chunk(c, h):                                # h: (BB, H) f32
        t0 = pl.multiple_of(c * unroll, unroll)
        # One load of this chunk's projections per batch (U x 3H each).
        ih_c = [ih_scr[b, pl.ds(t0, unroll), :] for b in range(BB)]
        h_rows = []
        for u in range(unroll):                     # static unroll
            # BB independent fused (1,H)@(H,3H) recurrent matmuls issued
            # back-to-back so MXU latency of one hides behind the others;
            # weights are read from the ref at use (no vreg pinning).
            hh = jnp.concatenate(
                [jnp.dot(h[b:b + 1, :].astype(w_hh_ref.dtype), w_hh_ref[b],
                         preferred_element_type=jnp.float32)
                 for b in range(BB)], axis=0)                       # (BB, 3H)
            ih = jnp.concatenate(
                [ih_c[b][u:u + 1, :] for b in range(BB)], axis=0)   # (BB, 3H)
            # Packed gate math: one sigmoid/tanh per gate per step.
            r = jax.nn.sigmoid(ih[:, :H] + hh[:, :H])
            z = jax.nn.sigmoid(ih[:, H:2 * H] + hh[:, H:2 * H])
            n = jnp.tanh(ih[:, 2 * H:] + r * (hh[:, 2 * H:] + b_hn))
            h = n + z * (h - n)                                     # (BB, H)
            h_rows.append(h)
        # Grouped, sublane-dense (unroll, H) store per batch.
        for b in range(BB):
            out_ref[b, pl.ds(t0, unroll), :] = jnp.concatenate(
                [h_rows[u][b:b + 1, :] for u in range(unroll)],
                axis=0).astype(out_ref.dtype)
        return h

    h_fin = lax.fori_loop(0, num_chunks, chunk, h_scr[...])
    h_scr[...] = h_fin
    for b in range(BB):
        hT_ref[b] = h_fin[b:b + 1, :].astype(hT_ref.dtype)


def _pick_batch_block(B, max_bb=8, min_grid_steps=1):
    """Largest divisor of B (<= max_bb); min_grid_steps=2 only helps v7x."""
    cand = [bb for bb in range(1, min(B, max_bb) + 1)
            if B % bb == 0 and (B // bb) >= min_grid_steps]
    return max(cand) if cand else 1


def _pick_time_chunk(T, max_tc=256):
    """Largest divisor of T that is a multiple of 8 and <= max_tc (else T)."""
    if T <= max_tc:
        return T
    best = None
    for tc in range(8, max_tc + 1, 8):
        if T % tc == 0:
            best = tc
    return best if best is not None else T


def _pick_unroll(tc, bb):
    cap = 4 if bb >= 4 else 8          # bound unroll*BB vreg pressure
    for u in (8, 4, 2, 1):
        if u <= cap and tc % u == 0:
            return u
    return 1


def _padded_bytes(shape, dtype):
    """VMEM bytes of one buffer with (8, 128) minor-dim tile padding."""
    s = list(shape)
    s[-1] = -(-s[-1] // 128) * 128
    if len(s) >= 2:
        s[-2] = -(-s[-2] // 8) * 8
    n = 1
    for d in s:
        n *= d
    return n * jnp.dtype(dtype).itemsize


def nonlearnable_cell_forward(xs, state, w_ih, w_hh, b_ih, b_hh,
                              *, compute_dtype=None, min_batch_grid_steps=1):
    """xs: (B,T,D_in), state: (1,B,H), w_ih: (B,D_in,3H), w_hh: (B,H,3H),
    b_ih/b_hh: (B,1,3H). Returns (outs (B,T,H), final_state (B,1,H)).
    compute_dtype=jnp.bfloat16 enables the bf16 MXU path (opt-in, inexact)."""
    B, T, D_in = xs.shape
    H = w_hh.shape[1]
    G3 = 3 * H
    assert w_ih.shape == (B, D_in, G3)
    assert w_hh.shape == (B, H, G3)
    assert state.shape == (1, B, H)

    BB = _pick_batch_block(B, min_grid_steps=min_batch_grid_steps)
    TC = _pick_time_chunk(T)
    U = _pick_unroll(TC, BB)

    # glue: rearrange '1 b h -> b 1 h'
    h0 = jnp.transpose(state, (1, 0, 2))                              # (B,1,H)

    # Pre-combined biases (small pass; weights are NOT reshuffled).
    b_ih2 = b_ih.reshape(B, G3).astype(jnp.float32)
    b_hh2 = b_hh.reshape(B, G3).astype(jnp.float32)
    bp = (b_ih2 + jnp.concatenate(
        [b_hh2[:, :2 * H], jnp.zeros_like(b_hh2[:, 2 * H:])], axis=-1)
          ).reshape(B, 1, G3)                                         # (B,1,3H)
    bn = b_hh2[:, 2 * H:].reshape(B, 1, H)                            # (B,1,H)

    if compute_dtype is not None:          # optional bf16 path (v6e/v7x)
        xs_k = xs.astype(compute_dtype)
        w_ih_k = w_ih.astype(compute_dtype)
        w_hh_k = w_hh.astype(compute_dtype)
    else:
        xs_k, w_ih_k, w_hh_k = xs, w_ih, w_hh

    grid = (B // BB, T // TC)

    in_specs = [
        pl.BlockSpec((BB, TC, D_in), lambda i, c: (i, c, 0)),   # xs
        pl.BlockSpec((BB, D_in, G3), lambda i, c: (i, 0, 0)),   # w_ih (T-invariant)
        pl.BlockSpec((BB, H, G3),    lambda i, c: (i, 0, 0)),   # w_hh (T-invariant)
        pl.BlockSpec((BB, 1, G3),    lambda i, c: (i, 0, 0)),   # bp
        pl.BlockSpec((BB, 1, H),     lambda i, c: (i, 0, 0)),   # bn
        pl.BlockSpec((BB, 1, H),     lambda i, c: (i, 0, 0)),   # h0
    ]
    out_specs = [
        pl.BlockSpec((BB, TC, H), lambda i, c: (i, c, 0)),      # outs
        pl.BlockSpec((BB, 1, H),  lambda i, c: (i, 0, 0)),      # final state
    ]
    scratch_shapes = [
        pltpu.VMEM((BB, TC, G3), jnp.float32),   # hoisted input projection
        pltpu.VMEM((BB, H), jnp.float32),        # h carried across time chunks
    ]

    # Explicit VMEM budget: double-buffered blocks + scratch, with headroom.
    io_shapes = [(BB, TC, D_in), (BB, D_in, G3), (BB, H, G3), (BB, 1, G3),
                 (BB, 1, H), (BB, 1, H), (BB, TC, H), (BB, 1, H)]
    io_dtypes = [xs_k.dtype, w_ih_k.dtype, w_hh_k.dtype, jnp.float32,
                 jnp.float32, h0.dtype, xs.dtype, state.dtype]
    est = 2 * sum(_padded_bytes(s, d) for s, d in zip(io_shapes, io_dtypes))
    est += _padded_bytes((BB, TC, G3), jnp.float32)
    est += _padded_bytes((BB, H), jnp.float32)
    vmem_limit = int(min(110 * 2**20, max(32 * 2**20, 2 * est)))

    kernel = functools.partial(gru_kernel, unroll=U)

    outs, h_final = pl.pallas_call(
        kernel,
        out_shape=(
            jax.ShapeDtypeStruct((B, T, H), xs.dtype),
            jax.ShapeDtypeStruct((B, 1, H), state.dtype),
        ),
        grid_spec=pltpu.PrefetchScalarGridSpec(
            num_scalar_prefetch=0,
            grid=grid,
            in_specs=in_specs,
            out_specs=out_specs,
            scratch_shapes=scratch_shapes,
        ),
        compiler_params=pltpu.CompilerParams(
            dimension_semantics=("parallel", "arbitrary"),
            vmem_limit_bytes=vmem_limit),
    )(xs_k, w_ih_k, w_hh_k, bp, bn, h0)
    return outs, h_final


def reference_forward(xs, state, w_ih, w_hh, b_ih, b_hh):
    """Pure-JAX reference mirroring the PyTorch module."""
    B, T, _ = xs.shape
    H = w_hh.shape[1]
    h = jnp.transpose(state, (1, 0, 2))  # (B, 1, H)
    outs = []
    for t in range(T):
        x_t = xs[:, t:t + 1, :]                             # (B, 1, D_in)
        ih = jnp.einsum('bij,bjk->bik', x_t, w_ih) + b_ih   # (B, 1, 3H)
        hh = jnp.einsum('bij,bjk->bik', h, w_hh) + b_hh
        i_r, i_i, i_n = ih[..., :H], ih[..., H:2 * H], ih[..., 2 * H:]
        h_r, h_i, h_n = hh[..., :H], hh[..., H:2 * H], hh[..., 2 * H:]
        r = jax.nn.sigmoid(i_r + h_r)
        z = jax.nn.sigmoid(i_i + h_i)
        n = jnp.tanh(i_n + r * h_n)
        h = n + z * (h - n)
        outs.append(h)
    return jnp.concatenate(outs, axis=1), h


if __name__ == "__main__":
    B, T, D_in, H = 4, 8, 16, 32
    G3 = 3 * H
    key = jax.random.PRNGKey(0)
    k1, k2, k3, k4, k5, k6 = jax.random.split(key, 6)

    xs = jax.random.normal(k1, (B, T, D_in), dtype=jnp.float32)
    state = jax.random.normal(k2, (1, B, H), dtype=jnp.float32)
    # deterministic synthetic "weights" (the module takes them as forward args)
    w_ih = jax.random.normal(k3, (B, D_in, G3), dtype=jnp.float32) * 0.1
    w_hh = jax.random.normal(k4, (B, H, G3), dtype=jnp.float32) * 0.1
    b_ih = jax.random.normal(k5, (B, 1, G3), dtype=jnp.float32) * 0.1
    b_hh = jax.random.normal(k6, (B, 1, G3), dtype=jnp.float32) * 0.1

    fwd = jax.jit(nonlearnable_cell_forward)   # wrapper preprocessing fuses
    outs, h_final = fwd(xs, state, w_ih, w_hh, b_ih, b_hh)
    jax.block_until_ready((outs, h_final))

    ref_outs, ref_h = reference_forward(xs, state, w_ih, w_hh, b_ih, b_hh)
    assert outs.shape == (B, T, H) and h_final.shape == (B, 1, H)
    assert jnp.allclose(outs, ref_outs, atol=1e-5, rtol=1e-5)
    assert jnp.allclose(h_final, ref_h, atol=1e-5, rtol=1e-5)
    print("KERNEL_OK")
</pallas_src>

<mosaic_0001>
module attributes {stable_mosaic.version = 11 : i64} {
  func.func @gru_kernel(%arg0: i32, %arg1: i32, %arg2: memref<4x8x16xf32, #tpu.memory_space<vmem>>, %arg3: memref<4x16x96xf32, #tpu.memory_space<vmem>>, %arg4: memref<4x32x96xf32, #tpu.memory_space<vmem>>, %arg5: memref<4x1x96xf32, #tpu.memory_space<vmem>>, %arg6: memref<4x1x32xf32, #tpu.memory_space<vmem>>, %arg7: memref<4x1x32xf32, #tpu.memory_space<vmem>>, %arg8: memref<4x8x32xf32, #tpu.memory_space<vmem>>, %arg9: memref<4x1x32xf32, #tpu.memory_space<vmem>>, %arg10: memref<4x8x96xf32, #tpu.memory_space<vmem>>, %arg11: memref<4x32xf32, #tpu.memory_space<vmem>>) attributes {dimension_semantics = [#tpu.dimension_semantics<parallel>, #tpu.dimension_semantics<arbitrary>], iteration_bounds = array<i64: 1, 1>, scalar_prefetch = 0 : i64, scratch_operands = 2 : i64, tpu.core_type = #tpu.core_type<tc>, window_params = [{transform_indices = @transform_0, window_bounds = array<i64: 4, 8, 16>}, {transform_indices = @transform_1, window_bounds = array<i64: 4, 16, 96>}, {transform_indices = @transform_2, window_bounds = array<i64: 4, 32, 96>}, {transform_indices = @transform_3, window_bounds = array<i64: 4, 1, 96>}, {transform_indices = @transform_4, window_bounds = array<i64: 4, 1, 32>}, {transform_indices = @transform_5, window_bounds = array<i64: 4, 1, 32>}, {transform_indices = @transform_6, window_bounds = array<i64: 4, 8, 32>}, {transform_indices = @transform_7, window_bounds = array<i64: 4, 1, 32>}]} {
    %c0 = arith.constant 0 : index
    %c0_0 = arith.constant 0 : index
    %c0_1 = arith.constant 0 : index
    %0 = vector.load %arg2[%c0, %c0_0, %c0_1] : memref<4x8x16xf32, #tpu.memory_space<vmem>>, vector<1x8x16xf32>
    %1 = vector.shape_cast %0 : vector<1x8x16xf32> to vector<8x16xf32>
    %c0_2 = arith.constant 0 : index
    %c0_3 = arith.constant 0 : index
    %c0_4 = arith.constant 0 : index
    %2 = vector.load %arg3[%c0_2, %c0_3, %c0_4] : memref<4x16x96xf32, #tpu.memory_space<vmem>>, vector<1x16x96xf32>
    %3 = vector.shape_cast %2 : vector<1x16x96xf32> to vector<16x96xf32>
    %cst = arith.constant dense<0.000000e+00> : vector<8x96xf32>
    %4 = tpu.matmul %1, %3, %cst {dimension_numbers = #tpu.dot_dimension_numbers<[1], [0], [0], [1], [0, 0, 1, 1], [], []>} : vector<8x16xf32>, vector<16x96xf32>, vector<8x96xf32> -> vector<8x96xf32>
    %c0_5 = arith.constant 0 : index
    %c0_6 = arith.constant 0 : index
    %c0_7 = arith.constant 0 : index
    %5 = vector.load %arg5[%c0_5, %c0_6, %c0_7] : memref<4x1x96xf32, #tpu.memory_space<vmem>>, vector<1x1x96xf32>
    %6 = vector.shape_cast %5 : vector<1x1x96xf32> to vector<1x96xf32>
    %7 = vector.broadcast %6 : vector<1x96xf32> to vector<8x96xf32>
    %8 = arith.addf %4, %7 : vector<8x96xf32>
    %c0_8 = arith.constant 0 : index
    %c0_9 = arith.constant 0 : index
    %c0_10 = arith.constant 0 : index
    %9 = vector.load %arg10[%c0_8, %c0_9, %c0_10] : memref<4x8x96xf32, #tpu.memory_space<vmem>>, vector<1x8x96xf32>
    %10 = vector.shape_cast %9 : vector<1x8x96xf32> to vector<8x96xf32>
    %11 = vector.shape_cast %8 : vector<8x96xf32> to vector<1x8x96xf32>
    tpu.vector_store %arg10[%c0_8, %c0_9, %c0_10], %11 {strides = array<i32>} : memref<4x8x96xf32, #tpu.memory_space<vmem>>, vector<1x8x96xf32>,
    %c1 = arith.constant 1 : index
    %c0_11 = arith.constant 0 : index
    %c0_12 = arith.constant 0 : index
    %12 = vector.load %arg2[%c1, %c0_11, %c0_12] : memref<4x8x16xf32, #tpu.memory_space<vmem>>, vector<1x8x16xf32>
    %13 = vector.shape_cast %12 : vector<1x8x16xf32> to vector<8x16xf32>
    %c1_13 = arith.constant 1 : index
    %c0_14 = arith.constant 0 : index
    %c0_15 = arith.constant 0 : index
    %14 = vector.load %arg3[%c1_13, %c0_14, %c0_15] : memref<4x16x96xf32, #tpu.memory_space<vmem>>, vector<1x16x96xf32>
    %15 = vector.shape_cast %14 : vector<1x16x96xf32> to vector<16x96xf32>
    %cst_16 = arith.constant dense<0.000000e+00> : vector<8x96xf32>
    %16 = tpu.matmul %13, %15, %cst_16 {dimension_numbers = #tpu.dot_dimension_numbers<[1], [0], [0], [1], [0, 0, 1, 1], [], []>} : vector<8x16xf32>, vector<16x96xf32>, vector<8x96xf32> -> vector<8x96xf32>
    %c1_17 = arith.constant 1 : index
    %c0_18 = arith.constant 0 : index
    %c0_19 = arith.constant 0 : index
    %17 = vector.load %arg5[%c1_17, %c0_18, %c0_19] : memref<4x1x96xf32, #tpu.memory_space<vmem>>, vector<1x1x96xf32>
    %18 = vector.shape_cast %17 : vector<1x1x96xf32> to vector<1x96xf32>
    %19 = vector.broadcast %18 : vector<1x96xf32> to vector<8x96xf32>
    %20 = arith.addf %16, %19 : vector<8x96xf32>
    %c1_20 = arith.constant 1 : index
    %c0_21 = arith.constant 0 : index
    %c0_22 = arith.constant 0 : index
    %21 = vector.load %arg10[%c1_20, %c0_21, %c0_22] : memref<4x8x96xf32, #tpu.memory_space<vmem>>, vector<1x8x96xf32>
    %22 = vector.shape_cast %21 : vector<1x8x96xf32> to vector<8x96xf32>
    %23 = vector.shape_cast %20 : vector<8x96xf32> to vector<1x8x96xf32>
    tpu.vector_store %arg10[%c1_20, %c0_21, %c0_22], %23 {strides = array<i32>} : memref<4x8x96xf32, #tpu.memory_space<vmem>>, vector<1x8x96xf32>,
    %c2 = arith.constant 2 : index
    %c0_23 = arith.constant 0 : index
    %c0_24 = arith.constant 0 : index
    %24 = vector.load %arg2[%c2, %c0_23, %c0_24] : memref<4x8x16xf32, #tpu.memory_space<vmem>>, vector<1x8x16xf32>
    %25 = vector.shape_cast %24 : vector<1x8x16xf32> to vector<8x16xf32>
    %c2_25 = arith.constant 2 : index
    %c0_26 = arith.constant 0 : index
    %c0_27 = arith.constant 0 : index
    %26 = vector.load %arg3[%c2_25, %c0_26, %c0_27] : memref<4x16x96xf32, #tpu.memory_space<vmem>>, vector<1x16x96xf32>
    %27 = vector.shape_cast %26 : vector<1x16x96xf32> to vector<16x96xf32>
    %cst_28 = arith.constant dense<0.000000e+00> : vector<8x96xf32>
    %28 = tpu.matmul %25, %27, %cst_28 {dimension_numbers = #tpu.dot_dimension_numbers<[1], [0], [0], [1], [0, 0, 1, 1], [], []>} : vector<8x16xf32>, vector<16x96xf32>, vector<8x96xf32> -> vector<8x96xf32>
    %c2_29 = arith.constant 2 : index
    %c0_30 = arith.constant 0 : index
    %c0_31 = arith.constant 0 : index
    %29 = vector.load %arg5[%c2_29, %c0_30, %c0_31] : memref<4x1x96xf32, #tpu.memory_space<vmem>>, vector<1x1x96xf32>
    %30 = vector.shape_cast %29 : vector<1x1x96xf32> to vector<1x96xf32>
    %31 = vector.broadcast %30 : vector<1x96xf32> to vector<8x96xf32>
    %32 = arith.addf %28, %31 : vector<8x96xf32>
    %c2_32 = arith.constant 2 : index
    %c0_33 = arith.constant 0 : index
    %c0_34 = arith.constant 0 : index
    %33 = vector.load %arg10[%c2_32, %c0_33, %c0_34] : memref<4x8x96xf32, #tpu.memory_space<vmem>>, vector<1x8x96xf32>
    %34 = vector.shape_cast %33 : vector<1x8x96xf32> to vector<8x96xf32>
    %35 = vector.shape_cast %32 : vector<8x96xf32> to vector<1x8x96xf32>
    tpu.vector_store %arg10[%c2_32, %c0_33, %c0_34], %35 {strides = array<i32>} : memref<4x8x96xf32, #tpu.memory_space<vmem>>, vector<1x8x96xf32>,
    %c3 = arith.constant 3 : index
    %c0_35 = arith.constant 0 : index
    %c0_36 = arith.constant 0 : index
    %36 = vector.load %arg2[%c3, %c0_35, %c0_36] : memref<4x8x16xf32, #tpu.memory_space<vmem>>, vector<1x8x16xf32>
    %37 = vector.shape_cast %36 : vector<1x8x16xf32> to vector<8x16xf32>
    %c3_37 = arith.constant 3 : index
    %c0_38 = arith.constant 0 : index
    %c0_39 = arith.constant 0 : index
    %38 = vector.load %arg3[%c3_37, %c0_38, %c0_39] : memref<4x16x96xf32, #tpu.memory_space<vmem>>, vector<1x16x96xf32>
    %39 = vector.shape_cast %38 : vector<1x16x96xf32> to vector<16x96xf32>
    %cst_40 = arith.constant dense<0.000000e+00> : vector<8x96xf32>
    %40 = tpu.matmul %37, %39, %cst_40 {dimension_numbers = #tpu.dot_dimension_numbers<[1], [0], [0], [1], [0, 0, 1, 1], [], []>} : vector<8x16xf32>, vector<16x96xf32>, vector<8x96xf32> -> vector<8x96xf32>
    %c3_41 = arith.constant 3 : index
    %c0_42 = arith.constant 0 : index
    %c0_43 = arith.constant 0 : index
    %41 = vector.load %arg5[%c3_41, %c0_42, %c0_43] : memref<4x1x96xf32, #tpu.memory_space<vmem>>, vector<1x1x96xf32>
    %42 = vector.shape_cast %41 : vector<1x1x96xf32> to vector<1x96xf32>
    %43 = vector.broadcast %42 : vector<1x96xf32> to vector<8x96xf32>
    %44 = arith.addf %40, %43 : vector<8x96xf32>
    %c3_44 = arith.constant 3 : index
    %c0_45 = arith.constant 0 : index
    %c0_46 = arith.constant 0 : index
    %45 = vector.load %arg10[%c3_44, %c0_45, %c0_46] : memref<4x8x96xf32, #tpu.memory_space<vmem>>, vector<1x8x96xf32>
    %46 = vector.shape_cast %45 : vector<1x8x96xf32> to vector<8x96xf32>
    %47 = vector.shape_cast %44 : vector<8x96xf32> to vector<1x8x96xf32>
    tpu.vector_store %arg10[%c3_44, %c0_45, %c0_46], %47 {strides = array<i32>} : memref<4x8x96xf32, #tpu.memory_space<vmem>>, vector<1x8x96xf32>,
    %c0_i32 = arith.constant 0 : i32
    %48 = arith.cmpi eq, %arg1, %c0_i32 : i32
    %49 = arith.extui %48 : i1 to i32
    %c0_i32_47 = arith.constant 0 : i32
    %50 = arith.cmpi ne, %49, %c0_i32_47 : i32
    scf.if %50 {
      %c0_78 = arith.constant 0 : index
      %c0_79 = arith.constant 0 : index
      %c0_80 = arith.constant 0 : index
      %80 = vector.load %arg7[%c0_78, %c0_79, %c0_80] : memref<4x1x32xf32, #tpu.memory_space<vmem>>, vector<1x1x32xf32>
      %81 = vector.shape_cast %80 : vector<1x1x32xf32> to vector<1x32xf32>
      %c1_81 = arith.constant 1 : index
      %c0_82 = arith.constant 0 : index
      %c0_83 = arith.constant 0 : index
      %82 = vector.load %arg7[%c1_81, %c0_82, %c0_83] : memref<4x1x32xf32, #tpu.memory_space<vmem>>, vector<1x1x32xf32>
      %83 = vector.shape_cast %82 : vector<1x1x32xf32> to vector<1x32xf32>
      %c2_84 = arith.constant 2 : index
      %c0_85 = arith.constant 0 : index
      %c0_86 = arith.constant 0 : index
      %84 = vector.load %arg7[%c2_84, %c0_85, %c0_86] : memref<4x1x32xf32, #tpu.memory_space<vmem>>, vector<1x1x32xf32>
      %85 = vector.shape_cast %84 : vector<1x1x32xf32> to vector<1x32xf32>
      %c3_87 = arith.constant 3 : index
      %c0_88 = arith.constant 0 : index
      %c0_89 = arith.constant 0 : index
      %86 = vector.load %arg7[%c3_87, %c0_88, %c0_89] : memref<4x1x32xf32, #tpu.memory_space<vmem>>, vector<1x1x32xf32>
      %87 = vector.shape_cast %86 : vector<1x1x32xf32> to vector<1x32xf32>
      %88 = tpu.concatenate %81, %83, %85, %87 in 0 : vector<1x32xf32>, vector<1x32xf32>, vector<1x32xf32>, vector<1x32xf32> -> vector<4x32xf32>
      %c0_90 = arith.constant 0 : index
      %c0_91 = arith.constant 0 : index
      %89 = vector.load %arg11[%c0_90, %c0_91] : memref<4x32xf32, #tpu.memory_space<vmem>>, vector<4x32xf32>
      tpu.vector_store %arg11[%c0_90, %c0_91], %88 {strides = array<i32>} : memref<4x32xf32, #tpu.memory_space<vmem>>, vector<4x32xf32>,
    } else {
    }
    %c0_48 = arith.constant 0 : index
    %c0_49 = arith.constant 0 : index
    %c0_50 = arith.constant 0 : index
    %51 = vector.load %arg6[%c0_48, %c0_49, %c0_50] : memref<4x1x32xf32, #tpu.memory_space<vmem>>, vector<1x1x32xf32>
    %52 = vector.shape_cast %51 : vector<1x1x32xf32> to vector<1x32xf32>
    %c1_51 = arith.constant 1 : index
    %c0_52 = arith.constant 0 : index
    %c0_53 = arith.constant 0 : index
    %53 = vector.load %arg6[%c1_51, %c0_52, %c0_53] : memref<4x1x32xf32, #tpu.memory_space<vmem>>, vector<1x1x32xf32>
    %54 = vector.shape_cast %53 : vector<1x1x32xf32> to vector<1x32xf32>
    %c2_54 = arith.constant 2 : index
    %c0_55 = arith.constant 0 : index
    %c0_56 = arith.constant 0 : index
    %55 = vector.load %arg6[%c2_54, %c0_55, %c0_56] : memref<4x1x32xf32, #tpu.memory_space<vmem>>, vector<1x1x32xf32>
    %56 = vector.shape_cast %55 : vector<1x1x32xf32> to vector<1x32xf32>
    %c3_57 = arith.constant 3 : index
    %c0_58 = arith.constant 0 : index
    %c0_59 = arith.constant 0 : index
    %57 = vector.load %arg6[%c3_57, %c0_58, %c0_59] : memref<4x1x32xf32, #tpu.memory_space<vmem>>, vector<1x1x32xf32>
    %58 = vector.shape_cast %57 : vector<1x1x32xf32> to vector<1x32xf32>
    %59 = tpu.concatenate %52, %54, %56, %58 in 0 : vector<1x32xf32>, vector<1x32xf32>, vector<1x32xf32>, vector<1x32xf32> -> vector<4x32xf32>
    %c0_60 = arith.constant 0 : index
    %c0_61 = arith.constant 0 : index
    %60 = vector.load %arg11[%c0_60, %c0_61] : memref<4x32xf32, #tpu.memory_space<vmem>>, vector<4x32xf32>
    %c0_i32_62 = arith.constant 0 : i32
    %c2_i32 = arith.constant 2 : i32
    %61 = arith.addi %c0_i32_62, %c2_i32 : i32
    %c1_i32 = arith.constant 1 : i32
    %62 = scf.for %arg12 = %c0_i32_62 to %61 step %c1_i32 iter_args(%arg13 = %60) -> (vector<4x32xf32>)  : i32 {
      %c4_i32 = arith.constant 4 : i32
      %80 = arith.muli %arg12, %c4_i32 : i32
      %81 = tpu.assume_multiple %80, 4 : i32
      %c0_78 = arith.constant 0 : index
      %82 = arith.index_cast %81 : i32 to index
      %c0_79 = arith.constant 0 : index
      %83 = vector.load %arg10[%c0_78, %82, %c0_79] : memref<4x8x96xf32, #tpu.memory_space<vmem>>, vector<1x4x96xf32>
      %84 = vector.shape_cast %83 : vector<1x4x96xf32> to vector<4x96xf32>
      %c1_80 = arith.constant 1 : index
      %85 = arith.index_cast %81 : i32 to index
      %c0_81 = arith.constant 0 : index
      %86 = vector.load %arg10[%c1_80, %85, %c0_81] : memref<4x8x96xf32, #tpu.memory_space<vmem>>, vector<1x4x96xf32>
      %87 = vector.shape_cast %86 : vector<1x4x96xf32> to vector<4x96xf32>
      %c2_82 = arith.constant 2 : index
      %88 = arith.index_cast %81 : i32 to index
      %c0_83 = arith.constant 0 : index
      %89 = vector.load %arg10[%c2_82, %88, %c0_83] : memref<4x8x96xf32, #tpu.memory_space<vmem>>, vector<1x4x96xf32>
      %90 = vector.shape_cast %89 : vector<1x4x96xf32> to vector<4x96xf32>
      %c3_84 = arith.constant 3 : index
      %91 = arith.index_cast %81 : i32 to index
      %c0_85 = arith.constant 0 : index
      %92 = vector.load %arg10[%c3_84, %91, %c0_85] : memref<4x8x96xf32, #tpu.memory_space<vmem>>, vector<1x4x96xf32>
      %93 = vector.shape_cast %92 : vector<1x4x96xf32> to vector<4x96xf32>
      %94 = vector.extract_strided_slice %arg13 {offsets = [0, 0], sizes = [1, 32], strides = [1, 1]} : vector<4x32xf32> to vector<1x32xf32>
      %c0_86 = arith.constant 0 : index
      %c0_87 = arith.constant 0 : index
      %c0_88 = arith.constant 0 : index
      %95 = vector.load %arg4[%c0_86, %c0_87, %c0_88] : memref<4x32x96xf32, #tpu.memory_space<vmem>>, vector<1x32x96xf32>
      %96 = vector.shape_cast %95 : vector<1x32x96xf32> to vector<32x96xf32>
      %cst_89 = arith.constant dense<0.000000e+00> : vector<1x96xf32>
      %97 = tpu.matmul %94, %96, %cst_89 {dimension_numbers = #tpu.dot_dimension_numbers<[1], [0], [0], [1], [0, 0, 1, 1], [], []>} : vector<1x32xf32>, vector<32x96xf32>, vector<1x96xf32> -> vector<1x96xf32>
      %98 = vector.extract_strided_slice %arg13 {offsets = [1, 0], sizes = [1, 32], strides = [1, 1]} : vector<4x32xf32> to vector<1x32xf32>
      %c1_90 = arith.constant 1 : index
      %c0_91 = arith.constant 0 : index
      %c0_92 = arith.constant 0 : index
      %99 = vector.load %arg4[%c1_90, %c0_91, %c0_92] : memref<4x32x96xf32, #tpu.memory_space<vmem>>, vector<1x32x96xf32>
      %100 = vector.shape_cast %99 : vector<1x32x96xf32> to vector<32x96xf32>
      %cst_93 = arith.constant dense<0.000000e+00> : vector<1x96xf32>
      %101 = tpu.matmul %98, %100, %cst_93 {dimension_numbers = #tpu.dot_dimension_numbers<[1], [0], [0], [1], [0, 0, 1, 1], [], []>} : vector<1x32xf32>, vector<32x96xf32>, vector<1x96xf32> -> vector<1x96xf32>
      %102 = vector.extract_strided_slice %arg13 {offsets = [2, 0], sizes = [1, 32], strides = [1, 1]} : vector<4x32xf32> to vector<1x32xf32>
      %c2_94 = arith.constant 2 : index
      %c0_95 = arith.constant 0 : index
      %c0_96 = arith.constant 0 : index
      %103 = vector.load %arg4[%c2_94, %c0_95, %c0_96] : memref<4x32x96xf32, #tpu.memory_space<vmem>>, vector<1x32x96xf32>
      %104 = vector.shape_cast %103 : vector<1x32x96xf32> to vector<32x96xf32>
      %cst_97 = arith.constant dense<0.000000e+00> : vector<1x96xf32>
      %105 = tpu.matmul %102, %104, %cst_97 {dimension_numbers = #tpu.dot_dimension_numbers<[1], [0], [0], [1], [0, 0, 1, 1], [], []>} : vector<1x32xf32>, vector<32x96xf32>, vector<1x96xf32> -> vector<1x96xf32>
      %106 = vector.extract_strided_slice %arg13 {offsets = [3, 0], sizes = [1, 32], strides = [1, 1]} : vector<4x32xf32> to vector<1x32xf32>
      %c3_98 = arith.constant 3 : index
      %c0_99 = arith.constant 0 : index
      %c0_100 = arith.constant 0 : index
      %107 = vector.load %arg4[%c3_98, %c0_99, %c0_100] : memref<4x32x96xf32, #tpu.memory_space<vmem>>, vector<1x32x96xf32>
      %108 = vector.shape_cast %107 : vector<1x32x96xf32> to vector<32x96xf32>
      %cst_101 = arith.constant dense<0.000000e+00> : vector<1x96xf32>
      %109 = tpu.matmul %106, %108, %cst_101 {dimension_numbers = #tpu.dot_dimension_numbers<[1], [0], [0], [1], [0, 0, 1, 1], [], []>} : vector<1x32xf32>, vector<32x96xf32>, vector<1x96xf32> -> vector<1x96xf32>
      %110 = tpu.concatenate %97, %101, %105, %109 in 0 : vector<1x96xf32>, vector<1x96xf32>, vector<1x96xf32>, vector<1x96xf32> -> vector<4x96xf32>
      %111 = vector.extract_strided_slice %84 {offsets = [0, 0], sizes = [1, 96], strides = [1, 1]} : vector<4x96xf32> to vector<1x96xf32>
      %112 = vector.extract_strided_slice %87 {offsets = [0, 0], sizes = [1, 96], strides = [1, 1]} : vector<4x96xf32> to vector<1x96xf32>
      %113 = vector.extract_strided_slice %90 {offsets = [0, 0], sizes = [1, 96], strides = [1, 1]} : vector<4x96xf32> to vector<1x96xf32>
      %114 = vector.extract_strided_slice %93 {offsets = [0, 0], sizes = [1, 96], strides = [1, 1]} : vector<4x96xf32> to vector<1x96xf32>
      %115 = tpu.concatenate %111, %112, %113, %114 in 0 : vector<1x96xf32>, vector<1x96xf32>, vector<1x96xf32>, vector<1x96xf32> -> vector<4x96xf32>
      %116 = vector.extract_strided_slice %115 {offsets = [0, 0], sizes = [4, 32], strides = [1, 1]} : vector<4x96xf32> to vector<4x32xf32>
      %117 = vector.extract_strided_slice %110 {offsets = [0, 0], sizes = [4, 32], strides = [1, 1]} : vector<4x96xf32> to vector<4x32xf32>
      %118 = arith.addf %116, %117 : vector<4x32xf32>
      %119 = arith.negf %118 : vector<4x32xf32>
      %120 = math.exp %119 : vector<4x32xf32>
      %cst_102 = arith.constant 1.000000e+00 : f32
      %121 = vector.broadcast %cst_102 : f32 to vector<4x32xf32>
      %122 = arith.addf %121, %120 : vector<4x32xf32>
      %123 = arith.divf %121, %122 : vector<4x32xf32>
      %124 = vector.extract_strided_slice %115 {offsets = [0, 32], sizes = [4, 32], strides = [1, 1]} : vector<4x96xf32> to vector<4x32xf32>
      %125 = vector.extract_strided_slice %110 {offsets = [0, 32], sizes = [4, 32], strides = [1, 1]} : vector<4x96xf32> to vector<4x32xf32>
      %126 = arith.addf %124, %125 : vector<4x32xf32>
      %127 = arith.negf %126 : vector<4x32xf32>
      %128 = math.exp %127 : vector<4x32xf32>
      %cst_103 = arith.constant 1.000000e+00 : f32
      %129 = vector.broadcast %cst_103 : f32 to vector<4x32xf32>
      %130 = arith.addf %129, %128 : vector<4x32xf32>
      %131 = arith.divf %129, %130 : vector<4x32xf32>
      %132 = vector.extract_strided_slice %115 {offsets = [0, 64], sizes = [4, 32], strides = [1, 1]} : vector<4x96xf32> to vector<4x32xf32>
      %133 = vector.extract_strided_slice %110 {offsets = [0, 64], sizes = [4, 32], strides = [1, 1]} : vector<4x96xf32> to vector<4x32xf32>
      %134 = arith.addf %133, %59 : vector<4x32xf32>
      %135 = arith.mulf %123, %134 : vector<4x32xf32>
      %136 = arith.addf %132, %135 : vector<4x32xf32>
      %137 = math.tanh %136 : vector<4x32xf32>
      %138 = arith.subf %arg13, %137 : vector<4x32xf32>
      %139 = arith.mulf %131, %138 : vector<4x32xf32>
      %140 = arith.addf %137, %139 : vector<4x32xf32>
      %141 = vector.extract_strided_slice %140 {offsets = [0, 0], sizes = [1, 32], strides = [1, 1]} : vector<4x32xf32> to vector<1x32xf32>
      %c0_104 = arith.constant 0 : index
      %c0_105 = arith.constant 0 : index
      %c0_106 = arith.constant 0 : index
      %142 = vector.load %arg4[%c0_104, %c0_105, %c0_106] : memref<4x32x96xf32, #tpu.memory_space<vmem>>, vector<1x32x96xf32>
      %143 = vector.shape_cast %142 : vector<1x32x96xf32> to vector<32x96xf32>
      %cst_107 = arith.constant dense<0.000000e+00> : vector<1x96xf32>
      %144 = tpu.matmul %141, %143, %cst_107 {dimension_numbers = #tpu.dot_dimension_numbers<[1], [0], [0], [1], [0, 0, 1, 1], [], []>} : vector<1x32xf32>, vector<32x96xf32>, vector<1x96xf32> -> vector<1x96xf32>
      %145 = vector.extract_strided_slice %140 {offsets = [1, 0], sizes = [1, 32], strides = [1, 1]} : vector<4x32xf32> to vector<1x32xf32>
      %c1_108 = arith.constant 1 : index
      %c0_109 = arith.constant 0 : index
      %c0_110 = arith.constant 0 : index
      %146 = vector.load %arg4[%c1_108, %c0_109, %c0_110] : memref<4x32x96xf32, #tpu.memory_space<vmem>>, vector<1x32x96xf32>
      %147 = vector.shape_cast %146 : vector<1x32x96xf32> to vector<32x96xf32>
      %cst_111 = arith.constant dense<0.000000e+00> : vector<1x96xf32>
      %148 = tpu.matmul %145, %147, %cst_111 {dimension_numbers = #tpu.dot_dimension_numbers<[1], [0], [0], [1], [0, 0, 1, 1], [], []>} : vector<1x32xf32>, vector<32x96xf32>, vector<1x96xf32> -> vector<1x96xf32>
      %149 = vector.extract_strided_slice %140 {offsets = [2, 0], sizes = [1, 32], strides = [1, 1]} : vector<4x32xf32> to vector<1x32xf32>
      %c2_112 = arith.constant 2 : index
      %c0_113 = arith.constant 0 : index
      %c0_114 = arith.constant 0 : index
      %150 = vector.load %arg4[%c2_112, %c0_113, %c0_114] : memref<4x32x96xf32, #tpu.memory_space<vmem>>, vector<1x32x96xf32>
      %151 = vector.shape_cast %150 : vector<1x32x96xf32> to vector<32x96xf32>
      %cst_115 = arith.constant dense<0.000000e+00> : vector<1x96xf32>
      %152 = tpu.matmul %149, %151, %cst_115 {dimension_numbers = #tpu.dot_dimension_numbers<[1], [0], [0], [1], [0, 0, 1, 1], [], []>} : vector<1x32xf32>, vector<32x96xf32>, vector<1x96xf32> -> vector<1x96xf32>
      %153 = vector.extract_strided_slice %140 {offsets = [3, 0], sizes = [1, 32], strides = [1, 1]} : vector<4x32xf32> to vector<1x32xf32>
      %c3_116 = arith.constant 3 : index
      %c0_117 = arith.constant 0 : index
      %c0_118 = arith.constant 0 : index
      %154 = vector.load %arg4[%c3_116, %c0_117, %c0_118] : memref<4x32x96xf32, #tpu.memory_space<vmem>>, vector<1x32x96xf32>
      %155 = vector.shape_cast %154 : vector<1x32x96xf32> to vector<32x96xf32>
      %cst_119 = arith.constant dense<0.000000e+00> : vector<1x96xf32>
      %156 = tpu.matmul %153, %155, %cst_119 {dimension_numbers = #tpu.dot_dimension_numbers<[1], [0], [0], [1], [0, 0, 1, 1], [], []>} : vector<1x32xf32>, vector<32x96xf32>, vector<1x96xf32> -> vector<1x96xf32>
      %157 = tpu.concatenate %144, %148, %152, %156 in 0 : vector<1x96xf32>, vector<1x96xf32>, vector<1x96xf32>, vector<1x96xf32> -> vector<4x96xf32>
      %158 = vector.extract_strided_slice %84 {offsets = [1, 0], sizes = [1, 96], strides = [1, 1]} : vector<4x96xf32> to vector<1x96xf32>
      %159 = vector.extract_strided_slice %87 {offsets = [1, 0], sizes = [1, 96], strides = [1, 1]} : vector<4x96xf32> to vector<1x96xf32>
      %160 = vector.extract_strided_slice %90 {offsets = [1, 0], sizes = [1, 96], strides = [1, 1]} : vector<4x96xf32> to vector<1x96xf32>
      %161 = vector.extract_strided_slice %93 {offsets = [1, 0], sizes = [1, 96], strides = [1, 1]} : vector<4x96xf32> to vector<1x96xf32>
      %162 = tpu.concatenate %158, %159, %160, %161 in 0 : vector<1x96xf32>, vector<1x96xf32>, vector<1x96xf32>, vector<1x96xf32> -> vector<4x96xf32>
      %163 = vector.extract_strided_slice %162 {offsets = [0, 0], sizes = [4, 32], strides = [1, 1]} : vector<4x96xf32> to vector<4x32xf32>
      %164 = vector.extract_strided_slice %157 {offsets = [0, 0], sizes = [4, 32], strides = [1, 1]} : vector<4x96xf32> to vector<4x32xf32>
      %165 = arith.addf %163, %164 : vector<4x32xf32>
      %166 = arith.negf %165 : vector<4x32xf32>
      %167 = math.exp %166 : vector<4x32xf32>
      %cst_120 = arith.constant 1.000000e+00 : f32
      %168 = vector.broadcast %cst_120 : f32 to vector<4x32xf32>
      %169 = arith.addf %168, %167 : vector<4x32xf32>
      %170 = arith.divf %168, %169 : vector<4x32xf32>
      %171 = vector.extract_strided_slice %162 {offsets = [0, 32], sizes = [4, 32], strides = [1, 1]} : vector<4x96xf32> to vector<4x32xf32>
      %172 = vector.extract_strided_slice %157 {offsets = [0, 32], sizes = [4, 32], strides = [1, 1]} : vector<4x96xf32> to vector<4x32xf32>
      %173 = arith.addf %171, %172 : vector<4x32xf32>
      %174 = arith.negf %173 : vector<4x32xf32>
      %175 = math.exp %174 : vector<4x32xf32>
      %cst_121 = arith.constant 1.000000e+00 : f32
      %176 = vector.broadcast %cst_121 : f32 to vector<4x32xf32>
      %177 = arith.addf %176, %175 : vector<4x32xf32>
      %178 = arith.divf %176, %177 : vector<4x32xf32>
      %179 = vector.extract_strided_slice %162 {offsets = [0, 64], sizes = [4, 32], strides = [1, 1]} : vector<4x96xf32> to vector<4x32xf32>
      %180 = vector.extract_strided_slice %157 {offsets = [0, 64], sizes = [4, 32], strides = [1, 1]} : vector<4x96xf32> to vector<4x32xf32>
      %181 = arith.addf %180, %59 : vector<4x32xf32>
      %182 = arith.mulf %170, %181 : vector<4x32xf32>
      %183 = arith.addf %179, %182 : vector<4x32xf32>
      %184 = math.tanh %183 : vector<4x32xf32>
      %185 = arith.subf %140, %184 : vector<4x32xf32>
      %186 = arith.mulf %178, %185 : vector<4x32xf32>
      %187 = arith.addf %184, %186 : vector<4x32xf32>
      %188 = vector.extract_strided_slice %187 {offsets = [0, 0], sizes = [1, 32], strides = [1, 1]} : vector<4x32xf32> to vector<1x32xf32>
      %c0_122 = arith.constant 0 : index
      %c0_123 = arith.constant 0 : index
      %c0_124 = arith.constant 0 : index
      %189 = vector.load %arg4[%c0_122, %c0_123, %c0_124] : memref<4x32x96xf32, #tpu.memory_space<vmem>>, vector<1x32x96xf32>
      %190 = vector.shape_cast %189 : vector<1x32x96xf32> to vector<32x96xf32>
      %cst_125 = arith.constant dense<0.000000e+00> : vector<1x96xf32>
      %191 = tpu.matmul %188, %190, %cst_125 {dimension_numbers = #tpu.dot_dimension_numbers<[1], [0], [0], [1], [0, 0, 1, 1], [], []>} : vector<1x32xf32>, vector<32x96xf32>, vector<1x96xf32> -> vector<1x96xf32>
      %192 = vector.extract_strided_slice %187 {offsets = [1, 0], sizes = [1, 32], strides = [1, 1]} : vector<4x32xf32> to vector<1x32xf32>
      %c1_126 = arith.constant 1 : index
      %c0_127 = arith.constant 0 : index
      %c0_128 = arith.constant 0 : index
      %193 = vector.load %arg4[%c1_126, %c0_127, %c0_128] : memref<4x32x96xf32, #tpu.memory_space<vmem>>, vector<1x32x96xf32>
      %194 = vector.shape_cast %193 : vector<1x32x96xf32> to vector<32x96xf32>
      %cst_129 = arith.constant dense<0.000000e+00> : vector<1x96xf32>
      %195 = tpu.matmul %192, %194, %cst_129 {dimension_numbers = #tpu.dot_dimension_numbers<[1], [0], [0], [1], [0, 0, 1, 1], [], []>} : vector<1x32xf32>, vector<32x96xf32>, vector<1x96xf32> -> vector<1x96xf32>
      %196 = vector.extract_strided_slice %187 {offsets = [2, 0], sizes = [1, 32], strides = [1, 1]} : vector<4x32xf32> to vector<1x32xf32>
      %c2_130 = arith.constant 2 : index
      %c0_131 = arith.constant 0 : index
      %c0_132 = arith.constant 0 : index
      %197 = vector.load %arg4[%c2_130, %c0_131, %c0_132] : memref<4x32x96xf32, #tpu.memory_space<vmem>>, vector<1x32x96xf32>
      %198 = vector.shape_cast %197 : vector<1x32x96xf32> to vector<32x96xf32>
      %cst_133 = arith.constant dense<0.000000e+00> : vector<1x96xf32>
      %199 = tpu.matmul %196, %198, %cst_133 {dimension_numbers = #tpu.dot_dimension_numbers<[1], [0], [0], [1], [0, 0, 1, 1], [], []>} : vector<1x32xf32>, vector<32x96xf32>, vector<1x96xf32> -> vector<1x96xf32>
      %200 = vector.extract_strided_slice %187 {offsets = [3, 0], sizes = [1, 32], strides = [1, 1]} : vector<4x32xf32> to vector<1x32xf32>
      %c3_134 = arith.constant 3 : index
      %c0_135 = arith.constant 0 : index
      %c0_136 = arith.constant 0 : index
      %201 = vector.load %arg4[%c3_134, %c0_135, %c0_136] : memref<4x32x96xf32, #tpu.memory_space<vmem>>, vector<1x32x96xf32>
      %202 = vector.shape_cast %201 : vector<1x32x96xf32> to vector<32x96xf32>
      %cst_137 = arith.constant dense<0.000000e+00> : vector<1x96xf32>
      %203 = tpu.matmul %200, %202, %cst_137 {dimension_numbers = #tpu.dot_dimension_numbers<[1], [0], [0], [1], [0, 0, 1, 1], [], []>} : vector<1x32xf32>, vector<32x96xf32>, vector<1x96xf32> -> vector<1x96xf32>
      %204 = tpu.concatenate %191, %195, %199, %203 in 0 : vector<1x96xf32>, vector<1x96xf32>, vector<1x96xf32>, vector<1x96xf32> -> vector<4x96xf32>
      %205 = vector.extract_strided_slice %84 {offsets = [2, 0], sizes = [1, 96], strides = [1, 1]} : vector<4x96xf32> to vector<1x96xf32>
      %206 = vector.extract_strided_slice %87 {offsets = [2, 0], sizes = [1, 96], strides = [1, 1]} : vector<4x96xf32> to vector<1x96xf32>
      %207 = vector.extract_strided_slice %90 {offsets = [2, 0], sizes = [1, 96], strides = [1, 1]} : vector<4x96xf32> to vector<1x96xf32>
      %208 = vector.extract_strided_slice %93 {offsets = [2, 0], sizes = [1, 96], strides = [1, 1]} : vector<4x96xf32> to vector<1x96xf32>
      %209 = tpu.concatenate %205, %206, %207, %208 in 0 : vector<1x96xf32>, vector<1x96xf32>, vector<1x96xf32>, vector<1x96xf32> -> vector<4x96xf32>
      %210 = vector.extract_strided_slice %209 {offsets = [0, 0], sizes = [4, 32], strides = [1, 1]} : vector<4x96xf32> to vector<4x32xf32>
      %211 = vector.extract_strided_slice %204 {offsets = [0, 0], sizes = [4, 32], strides = [1, 1]} : vector<4x96xf32> to vector<4x32xf32>
      %212 = arith.addf %210, %211 : vector<4x32xf32>
      %213 = arith.negf %212 : vector<4x32xf32>
      %214 = math.exp %213 : vector<4x32xf32>
      %cst_138 = arith.constant 1.000000e+00 : f32
      %215 = vector.broadcast %cst_138 : f32 to vector<4x32xf32>
      %216 = arith.addf %215, %214 : vector<4x32xf32>
      %217 = arith.divf %215, %216 : vector<4x32xf32>
      %218 = vector.extract_strided_slice %209 {offsets = [0, 32], sizes = [4, 32], strides = [1, 1]} : vector<4x96xf32> to vector<4x32xf32>
      %219 = vector.extract_strided_slice %204 {offsets = [0, 32], sizes = [4, 32], strides = [1, 1]} : vector<4x96xf32> to vector<4x32xf32>
      %220 = arith.addf %218, %219 : vector<4x32xf32>
      %221 = arith.negf %220 : vector<4x32xf32>
      %222 = math.exp %221 : vector<4x32xf32>
      %cst_139 = arith.constant 1.000000e+00 : f32
      %223 = vector.broadcast %cst_139 : f32 to vector<4x32xf32>
      %224 = arith.addf %223, %222 : vector<4x32xf32>
      %225 = arith.divf %223, %224 : vector<4x32xf32>
      %226 = vector.extract_strided_slice %209 {offsets = [0, 64], sizes = [4, 32], strides = [1, 1]} : vector<4x96xf32> to vector<4x32xf32>
      %227 = vector.extract_strided_slice %204 {offsets = [0, 64], sizes = [4, 32], strides = [1, 1]} : vector<4x96xf32> to vector<4x32xf32>
      %228 = arith.addf %227, %59 : vector<4x32xf32>
      %229 = arith.mulf %217, %228 : vector<4x32xf32>
      %230 = arith.addf %226, %229 : vector<4x32xf32>
      %231 = math.tanh %230 : vector<4x32xf32>
      %232 = arith.subf %187, %231 : vector<4x32xf32>
      %233 = arith.mulf %225, %232 : vector<4x32xf32>
      %234 = arith.addf %231, %233 : vector<4x32xf32>
      %235 = vector.extract_strided_slice %234 {offsets = [0, 0], sizes = [1, 32], strides = [1, 1]} : vector<4x32xf32> to vector<1x32xf32>
      %c0_140 = arith.constant 0 : index
      %c0_141 = arith.constant 0 : index
      %c0_142 = arith.constant 0 : index
      %236 = vector.load %arg4[%c0_140, %c0_141, %c0_142] : memref<4x32x96xf32, #tpu.memory_space<vmem>>, vector<1x32x96xf32>
      %237 = vector.shape_cast %236 : vector<1x32x96xf32> to vector<32x96xf32>
      %cst_143 = arith.constant dense<0.000000e+00> : vector<1x96xf32>
      %238 = tpu.matmul %235, %237, %cst_143 {dimension_numbers = #tpu.dot_dimension_numbers<[1], [0], [0], [1], [0, 0, 1, 1], [], []>} : vector<1x32xf32>, vector<32x96xf32>, vector<1x96xf32> -> vector<1x96xf32>
      %239 = vector.extract_strided_slice %234 {offsets = [1, 0], sizes = [1, 32], strides = [1, 1]} : vector<4x32xf32> to vector<1x32xf32>
      %c1_144 = arith.constant 1 : index
      %c0_145 = arith.constant 0 : index
      %c0_146 = arith.constant 0 : index
      %240 = vector.load %arg4[%c1_144, %c0_145, %c0_146] : memref<4x32x96xf32, #tpu.memory_space<vmem>>, vector<1x32x96xf32>
      %241 = vector.shape_cast %240 : vector<1x32x96xf32> to vector<32x96xf32>
      %cst_147 = arith.constant dense<0.000000e+00> : vector<1x96xf32>
      %242 = tpu.matmul %239, %241, %cst_147 {dimension_numbers = #tpu.dot_dimension_numbers<[1], [0], [0], [1], [0, 0, 1, 1], [], []>} : vector<1x32xf32>, vector<32x96xf32>, vector<1x96xf32> -> vector<1x96xf32>
      %243 = vector.extract_strided_slice %234 {offsets = [2, 0], sizes = [1, 32], strides = [1, 1]} : vector<4x32xf32> to vector<1x32xf32>
      %c2_148 = arith.constant 2 : index
      %c0_149 = arith.constant 0 : index
      %c0_150 = arith.constant 0 : index
      %244 = vector.load %arg4[%c2_148, %c0_149, %c0_150] : memref<4x32x96xf32, #tpu.memory_space<vmem>>, vector<1x32x96xf32>
      %245 = vector.shape_cast %244 : vector<1x32x96xf32> to vector<32x96xf32>
      %cst_151 = arith.constant dense<0.000000e+00> : vector<1x96xf32>
      %246 = tpu.matmul %243, %245, %cst_151 {dimension_numbers = #tpu.dot_dimension_numbers<[1], [0], [0], [1], [0, 0, 1, 1], [], []>} : vector<1x32xf32>, vector<32x96xf32>, vector<1x96xf32> -> vector<1x96xf32>
      %247 = vector.extract_strided_slice %234 {offsets = [3, 0], sizes = [1, 32], strides = [1, 1]} : vector<4x32xf32> to vector<1x32xf32>
      %c3_152 = arith.constant 3 : index
      %c0_153 = arith.constant 0 : index
      %c0_154 = arith.constant 0 : index
      %248 = vector.load %arg4[%c3_152, %c0_153, %c0_154] : memref<4x32x96xf32, #tpu.memory_space<vmem>>, vector<1x32x96xf32>
      %249 = vector.shape_cast %248 : vector<1x32x96xf32> to vector<32x96xf32>
      %cst_155 = arith.constant dense<0.000000e+00> : vector<1x96xf32>
      %250 = tpu.matmul %247, %249, %cst_155 {dimension_numbers = #tpu.dot_dimension_numbers<[1], [0], [0], [1], [0, 0, 1, 1], [], []>} : vector<1x32xf32>, vector<32x96xf32>, vector<1x96xf32> -> vector<1x96xf32>
      %251 = tpu.concatenate %238, %242, %246, %250 in 0 : vector<1x96xf32>, vector<1x96xf32>, vector<1x96xf32>, vector<1x96xf32> -> vector<4x96xf32>
      %252 = vector.extract_strided_slice %84 {offsets = [3, 0], sizes = [1, 96], strides = [1, 1]} : vector<4x96xf32> to vector<1x96xf32>
      %253 = vector.extract_strided_slice %87 {offsets = [3, 0], sizes = [1, 96], strides = [1, 1]} : vector<4x96xf32> to vector<1x96xf32>
      %254 = vector.extract_strided_slice %90 {offsets = [3, 0], sizes = [1, 96], strides = [1, 1]} : vector<4x96xf32> to vector<1x96xf32>
      %255 = vector.extract_strided_slice %93 {offsets = [3, 0], sizes = [1, 96], strides = [1, 1]} : vector<4x96xf32> to vector<1x96xf32>
      %256 = tpu.concatenate %252, %253, %254, %255 in 0 : vector<1x96xf32>, vector<1x96xf32>, vector<1x96xf32>, vector<1x96xf32> -> vector<4x96xf32>
      %257 = vector.extract_strided_slice %256 {offsets = [0, 0], sizes = [4, 32], strides = [1, 1]} : vector<4x96xf32> to vector<4x32xf32>
      %258 = vector.extract_strided_slice %251 {offsets = [0, 0], sizes = [4, 32], strides = [1, 1]} : vector<4x96xf32> to vector<4x32xf32>
      %259 = arith.addf %257, %258 : vector<4x32xf32>
      %260 = arith.negf %259 : vector<4x32xf32>
      %261 = math.exp %260 : vector<4x32xf32>
      %cst_156 = arith.constant 1.000000e+00 : f32
      %262 = vector.broadcast %cst_156 : f32 to vector<4x32xf32>
      %263 = arith.addf %262, %261 : vector<4x32xf32>
      %264 = arith.divf %262, %263 : vector<4x32xf32>
      %265 = vector.extract_strided_slice %256 {offsets = [0, 32], sizes = [4, 32], strides = [1, 1]} : vector<4x96xf32> to vector<4x32xf32>
      %266 = vector.extract_strided_slice %251 {offsets = [0, 32], sizes = [4, 32], strides = [1, 1]} : vector<4x96xf32> to vector<4x32xf32>
      %267 = arith.addf %265, %266 : vector<4x32xf32>
      %268 = arith.negf %267 : vector<4x32xf32>
      %269 = math.exp %268 : vector<4x32xf32>
      %cst_157 = arith.constant 1.000000e+00 : f32
      %270 = vector.broadcast %cst_157 : f32 to vector<4x32xf32>
      %271 = arith.addf %270, %269 : vector<4x32xf32>
      %272 = arith.divf %270, %271 : vector<4x32xf32>
      %273 = vector.extract_strided_slice %256 {offsets = [0, 64], sizes = [4, 32], strides = [1, 1]} : vector<4x96xf32> to vector<4x32xf32>
      %274 = vector.extract_strided_slice %251 {offsets = [0, 64], sizes = [4, 32], strides = [1, 1]} : vector<4x96xf32> to vector<4x32xf32>
      %275 = arith.addf %274, %59 : vector<4x32xf32>
      %276 = arith.mulf %264, %275 : vector<4x32xf32>
      %277 = arith.addf %273, %276 : vector<4x32xf32>
      %278 = math.tanh %277 : vector<4x32xf32>
      %279 = arith.subf %234, %278 : vector<4x32xf32>
      %280 = arith.mulf %272, %279 : vector<4x32xf32>
      %281 = arith.addf %278, %280 : vector<4x32xf32>
      %282 = vector.extract_strided_slice %140 {offsets = [0, 0], sizes = [1, 32], strides = [1, 1]} : vector<4x32xf32> to vector<1x32xf32>
      %283 = vector.extract_strided_slice %187 {offsets = [0, 0], sizes = [1, 32], strides = [1, 1]} : vector<4x32xf32> to vector<1x32xf32>
      %284 = vector.extract_strided_slice %234 {offsets = [0, 0], sizes = [1, 32], strides = [1, 1]} : vector<4x32xf32> to vector<1x32xf32>
      %285 = vector.extract_strided_slice %281 {offsets = [0, 0], sizes = [1, 32], strides = [1, 1]} : vector<4x32xf32> to vector<1x32xf32>
      %286 = tpu.concatenate %282, %283, %284, %285 in 0 : vector<1x32xf32>, vector<1x32xf32>, vector<1x32xf32>, vector<1x32xf32> -> vector<4x32xf32>
      %c0_158 = arith.constant 0 : index
      %287 = arith.index_cast %81 : i32 to index
      %c0_159 = arith.constant 0 : index
      %288 = vector.load %arg8[%c0_158, %287, %c0_159] : memref<4x8x32xf32, #tpu.memory_space<vmem>>, vector<1x4x32xf32>
      %289 = vector.shape_cast %288 : vector<1x4x32xf32> to vector<4x32xf32>
      %290 = vector.shape_cast %286 : vector<4x32xf32> to vector<1x4x32xf32>
      tpu.vector_store %arg8[%c0_158, %287, %c0_159], %290 {strides = array<i32>} : memref<4x8x32xf32, #tpu.memory_space<vmem>>, vector<1x4x32xf32>,
      %291 = vector.extract_strided_slice %140 {offsets = [1, 0], sizes = [1, 32], strides = [1, 1]} : vector<4x32xf32> to vector<1x32xf32>
      %292 = vector.extract_strided_slice %187 {offsets = [1, 0], sizes = [1, 32], strides = [1, 1]} : vector<4x32xf32> to vector<1x32xf32>
      %293 = vector.extract_strided_slice %234 {offsets = [1, 0], sizes = [1, 32], strides = [1, 1]} : vector<4x32xf32> to vector<1x32xf32>
      %294 = vector.extract_strided_slice %281 {offsets = [1, 0], sizes = [1, 32], strides = [1, 1]} : vector<4x32xf32> to vector<1x32xf32>
      %295 = tpu.concatenate %291, %292, %293, %294 in 0 : vector<1x32xf32>, vector<1x32xf32>, vector<1x32xf32>, vector<1x32xf32> -> vector<4x32xf32>
      %c1_160 = arith.constant 1 : index
      %296 = arith.index_cast %81 : i32 to index
      %c0_161 = arith.constant 0 : index
      %297 = vector.load %arg8[%c1_160, %296, %c0_161] : memref<4x8x32xf32, #tpu.memory_space<vmem>>, vector<1x4x32xf32>
      %298 = vector.shape_cast %297 : vector<1x4x32xf32> to vector<4x32xf32>
      %299 = vector.shape_cast %295 : vector<4x32xf32> to vector<1x4x32xf32>
      tpu.vector_store %arg8[%c1_160, %296, %c0_161], %299 {strides = array<i32>} : memref<4x8x32xf32, #tpu.memory_space<vmem>>, vector<1x4x32xf32>,
      %300 = vector.extract_strided_slice %140 {offsets = [2, 0], sizes = [1, 32], strides = [1, 1]} : vector<4x32xf32> to vector<1x32xf32>
      %301 = vector.extract_strided_slice %187 {offsets = [2, 0], sizes = [1, 32], strides = [1, 1]} : vector<4x32xf32> to vector<1x32xf32>
      %302 = vector.extract_strided_slice %234 {offsets = [2, 0], sizes = [1, 32], strides = [1, 1]} : vector<4x32xf32> to vector<1x32xf32>
      %303 = vector.extract_strided_slice %281 {offsets = [2, 0], sizes = [1, 32], strides = [1, 1]} : vector<4x32xf32> to vector<1x32xf32>
      %304 = tpu.concatenate %300, %301, %302, %303 in 0 : vector<1x32xf32>, vector<1x32xf32>, vector<1x32xf32>, vector<1x32xf32> -> vector<4x32xf32>
      %c2_162 = arith.constant 2 : index
      %305 = arith.index_cast %81 : i32 to index
      %c0_163 = arith.constant 0 : index
      %306 = vector.load %arg8[%c2_162, %305, %c0_163] : memref<4x8x32xf32, #tpu.memory_space<vmem>>, vector<1x4x32xf32>
      %307 = vector.shape_cast %306 : vector<1x4x32xf32> to vector<4x32xf32>
      %308 = vector.shape_cast %304 : vector<4x32xf32> to vector<1x4x32xf32>
      tpu.vector_store %arg8[%c2_162, %305, %c0_163], %308 {strides = array<i32>} : memref<4x8x32xf32, #tpu.memory_space<vmem>>, vector<1x4x32xf32>,
      %309 = vector.extract_strided_slice %140 {offsets = [3, 0], sizes = [1, 32], strides = [1, 1]} : vector<4x32xf32> to vector<1x32xf32>
      %310 = vector.extract_strided_slice %187 {offsets = [3, 0], sizes = [1, 32], strides = [1, 1]} : vector<4x32xf32> to vector<1x32xf32>
      %311 = vector.extract_strided_slice %234 {offsets = [3, 0], sizes = [1, 32], strides = [1, 1]} : vector<4x32xf32> to vector<1x32xf32>
      %312 = vector.extract_strided_slice %281 {offsets = [3, 0], sizes = [1, 32], strides = [1, 1]} : vector<4x32xf32> to vector<1x32xf32>
      %313 = tpu.concatenate %309, %310, %311, %312 in 0 : vector<1x32xf32>, vector<1x32xf32>, vector<1x32xf32>, vector<1x32xf32> -> vector<4x32xf32>
      %c3_164 = arith.constant 3 : index
      %314 = arith.index_cast %81 : i32 to index
      %c0_165 = arith.constant 0 : index
      %315 = vector.load %arg8[%c3_164, %314, %c0_165] : memref<4x8x32xf32, #tpu.memory_space<vmem>>, vector<1x4x32xf32>
      %316 = vector.shape_cast %315 : vector<1x4x32xf32> to vector<4x32xf32>
      %317 = vector.shape_cast %313 : vector<4x32xf32> to vector<1x4x32xf32>
      tpu.vector_store %arg8[%c3_164, %314, %c0_165], %317 {strides = array<i32>} : memref<4x8x32xf32, #tpu.memory_space<vmem>>, vector<1x4x32xf32>,
      scf.yield %281 : vector<4x32xf32>
    }
    %c2_i32_63 = arith.constant 2 : i32
    %c0_64 = arith.constant 0 : index
    %c0_65 = arith.constant 0 : index
    %63 = vector.load %arg11[%c0_64, %c0_65] : memref<4x32xf32, #tpu.memory_space<vmem>>, vector<4x32xf32>
    tpu.vector_store %arg11[%c0_64, %c0_65], %62 {strides = array<i32>} : memref<4x32xf32, #tpu.memory_space<vmem>>, vector<4x32xf32>,
    %64 = vector.extract_strided_slice %62 {offsets = [0, 0], sizes = [1, 32], strides = [1, 1]} : vector<4x32xf32> to vector<1x32xf32>
    %c0_66 = arith.constant 0 : index
    %c0_67 = arith.constant 0 : index
    %c0_68 = arith.constant 0 : index
    %65 = vector.load %arg9[%c0_66, %c0_67, %c0_68] : memref<4x1x32xf32, #tpu.memory_space<vmem>>, vector<1x1x32xf32>
    %66 = vector.shape_cast %65 : vector<1x1x32xf32> to vector<1x32xf32>
    %67 = vector.shape_cast %64 : vector<1x32xf32> to vector<1x1x32xf32>
    tpu.vector_store %arg9[%c0_66, %c0_67, %c0_68], %67 {strides = array<i32>} : memref<4x1x32xf32, #tpu.memory_space<vmem>>, vector<1x1x32xf32>,
    %68 = vector.extract_strided_slice %62 {offsets = [1, 0], sizes = [1, 32], strides = [1, 1]} : vector<4x32xf32> to vector<1x32xf32>
    %c1_69 = arith.constant 1 : index
    %c0_70 = arith.constant 0 : index
    %c0_71 = arith.constant 0 : index
    %69 = vector.load %arg9[%c1_69, %c0_70, %c0_71] : memref<4x1x32xf32, #tpu.memory_space<vmem>>, vector<1x1x32xf32>
    %70 = vector.shape_cast %69 : vector<1x1x32xf32> to vector<1x32xf32>
    %71 = vector.shape_cast %68 : vector<1x32xf32> to vector<1x1x32xf32>
    tpu.vector_store %arg9[%c1_69, %c0_70, %c0_71], %71 {strides = array<i32>} : memref<4x1x32xf32, #tpu.memory_space<vmem>>, vector<1x1x32xf32>,
    %72 = vector.extract_strided_slice %62 {offsets = [2, 0], sizes = [1, 32], strides = [1, 1]} : vector<4x32xf32> to vector<1x32xf32>
    %c2_72 = arith.constant 2 : index
    %c0_73 = arith.constant 0 : index
    %c0_74 = arith.constant 0 : index
    %73 = vector.load %arg9[%c2_72, %c0_73, %c0_74] : memref<4x1x32xf32, #tpu.memory_space<vmem>>, vector<1x1x32xf32>
    %74 = vector.shape_cast %73 : vector<1x1x32xf32> to vector<1x32xf32>
    %75 = vector.shape_cast %72 : vector<1x32xf32> to vector<1x1x32xf32>
    tpu.vector_store %arg9[%c2_72, %c0_73, %c0_74], %75 {strides = array<i32>} : memref<4x1x32xf32, #tpu.memory_space<vmem>>, vector<1x1x32xf32>,
    %76 = vector.extract_strided_slice %62 {offsets = [3, 0], sizes = [1, 32], strides = [1, 1]} : vector<4x32xf32> to vector<1x32xf32>
    %c3_75 = arith.constant 3 : index
    %c0_76 = arith.constant 0 : index
    %c0_77 = arith.constant 0 : index
    %77 = vector.load %arg9[%c3_75, %c0_76, %c0_77] : memref<4x1x32xf32, #tpu.memory_space<vmem>>, vector<1x1x32xf32>
    %78 = vector.shape_cast %77 : vector<1x1x32xf32> to vector<1x32xf32>
    %79 = vector.shape_cast %76 : vector<1x32xf32> to vector<1x1x32xf32>
    tpu.vector_store %arg9[%c3_75, %c0_76, %c0_77], %79 {strides = array<i32>} : memref<4x1x32xf32, #tpu.memory_space<vmem>>, vector<1x1x32xf32>,
    return
  }
  func.func @transform_0(%arg0: i32, %arg1: i32) -> (i32, i32, i32) {
    %c0_i32 = arith.constant 0 : i32
    %c0_i32_0 = arith.constant 0 : i32
    return %arg0, %arg1, %c0_i32 : i32, i32, i32
  }
  func.func @transform_1(%arg0: i32, %arg1: i32) -> (i32, i32, i32) {
    %c0_i32 = arith.constant 0 : i32
    %c0_i32_0 = arith.constant 0 : i32
    %c0_i32_1 = arith.constant 0 : i32
    return %arg0, %c0_i32, %c0_i32_0 : i32, i32, i32
  }
  func.func @transform_2(%arg0: i32, %arg1: i32) -> (i32, i32, i32) {
    %c0_i32 = arith.constant 0 : i32
    %c0_i32_0 = arith.constant 0 : i32
    %c0_i32_1 = arith.constant 0 : i32
    return %arg0, %c0_i32, %c0_i32_0 : i32, i32, i32
  }
  func.func @transform_3(%arg0: i32, %arg1: i32) -> (i32, i32, i32) {
    %c0_i32 = arith.constant 0 : i32
    %c0_i32_0 = arith.constant 0 : i32
    %c0_i32_1 = arith.constant 0 : i32
    return %arg0, %c0_i32, %c0_i32_0 : i32, i32, i32
  }
  func.func @transform_4(%arg0: i32, %arg1: i32) -> (i32, i32, i32) {
    %c0_i32 = arith.constant 0 : i32
    %c0_i32_0 = arith.constant 0 : i32
    %c0_i32_1 = arith.constant 0 : i32
    return %arg0, %c0_i32, %c0_i32_0 : i32, i32, i32
  }
  func.func @transform_5(%arg0: i32, %arg1: i32) -> (i32, i32, i32) {
    %c0_i32 = arith.constant 0 : i32
    %c0_i32_0 = arith.constant 0 : i32
    %c0_i32_1 = arith.constant 0 : i32
    return %arg0, %c0_i32, %c0_i32_0 : i32, i32, i32
  }
  func.func @transform_6(%arg0: i32, %arg1: i32) -> (i32, i32, i32) {
    %c0_i32 = arith.constant 0 : i32
    %c0_i32_0 = arith.constant 0 : i32
    return %arg0, %arg1, %c0_i32 : i32, i32, i32
  }
  func.func @transform_7(%arg0: i32, %arg1: i32) -> (i32, i32, i32) {
    %c0_i32 = arith.constant 0 : i32
    %c0_i32_0 = arith.constant 0 : i32
    %c0_i32_1 = arith.constant 0 : i32
    return %arg0, %c0_i32, %c0_i32_0 : i32, i32, i32
  }
}

</mosaic_0001>

<llo_original>
// kernel: nonlearnable_cell_forward.1
$region0: #{nonlearnable_cell_forward.1}
  #allocation0 [shape = 'u32[]', space=smem, size = 0x4, offset = 0x4, fixed_abs, tag = 'smem constant byte address 0x4 - core index']
  #allocation1 [shape = 'u32[144,128]{1,0:T(1,128)}', space=vmem, size = 0x12000, scoped, tag = 'internal scratch']
  #allocation2 [shape = 'f32[4,8,96]{2,1,0:T(8,128)}', space=vmem, size = 0x4000, scoped, tag = 'scratch operand']
  #allocation3 [shape = 'f32[4,32]{1,0:T(4,128)}', space=vmem, size = 0x800, scoped, tag = 'scratch operand']
  %s0 = inlined_call_operand.vmem [shape: f32[4,8,16], index: 0, kind: input, shape index: {}]
  %s1 = inlined_call_operand.hbm [shape: f32[4,16,96], index: 1, kind: input, shape index: {}]
  %s2 = inlined_call_operand.hbm [shape: f32[4,32,96], index: 2, kind: input, shape index: {}]
  %s3 = inlined_call_operand.vmem [shape: f32[4,1,96], index: 3, kind: input, shape index: {}]
  %s4 = inlined_call_operand.vmem [shape: f32[4,1,32], index: 4, kind: input, shape index: {}]
  %s5 = inlined_call_operand.hbm [shape: f32[4,1,32], index: 5, kind: input, shape index: {}]
  %s6 = inlined_call_operand.hbm [shape: f32[4,8,32], index: 6, kind: output, shape index: {0}]
  %s7 = inlined_call_operand.hbm [shape: f32[4,1,32], index: 7, kind: output, shape index: {1}]
  %8 = xla_tuple %s6, %s7
  %s9 = sld [smem:[#allocation0]]
  $region65: #{nonlearnable_cell_forward.1} parent=0
    _
  %s11 = ssub.s32 1, %s9
  %s12 = scalar_select 0, %s11, %s9
  $region1: #{nonlearnable_cell_forward.1} parent=0
    #allocation4 [shape = 'u8[32768]{0}', space=vmem, size = 0x8000, scoped, tag = 'input window, operand 1, single buffered']
    #allocation5 [shape = 's32[1]{0}', space=sflag, size = 0x4, scoped, tag = 'scoped memory for nonlearnable_cell_forward.1']
    #allocation6 [shape = 's32[1]{0}', space=sflag, size = 0x4, scoped, tag = 'scoped memory for nonlearnable_cell_forward.1']
    #allocation7 [shape = 'u8[65536]{0}', space=vmem, size = 0x10000, scoped, tag = 'input window, operand 2, single buffered']
    #allocation8 [shape = 's32[1]{0}', space=sflag, size = 0x4, scoped, tag = 'scoped memory for nonlearnable_cell_forward.1']
    #allocation9 [shape = 'u8[2048]{0}', space=vmem, size = 0x800, scoped, tag = 'input window, operand 5, single buffered']
    #allocation10 [shape = 'u8[16384]{0}', space=vmem, size = 0x4000, scoped, tag = 'output window, operand 0, single buffered']
    #allocation11 [shape = 'u8[2048]{0}', space=vmem, size = 0x800, scoped, tag = 'output window, operand 1, single buffered']
    #allocation12 [shape = 's32[1]{0}', space=sflag, size = 0x4, scoped, tag = 'scoped memory for nonlearnable_cell_forward.1']
    %13 = vsyncpa [#allocation5], 0
    %14 = vsyncpa [#allocation8], 0
    %15 = vsyncpa [#allocation6], 0
    %16 = vsyncpa [#allocation12], 0
    // Predicated region
    $region2: #{nonlearnable_cell_forward.1} parent=1 // pred_check
      _
    $region3: #{nonlearnable_cell_forward.1} parent=1 // pred_check_branch
      %18 = sbr.rel (0) target = $region5
    $region4: #{nonlearnable_cell_forward.1} parent=1 // pred_region
      _
    $region5: #{nonlearnable_cell_forward.1} parent=1 // pred_fallthru
      _
    // Predicated region
    $region6: #{nonlearnable_cell_forward.1} parent=1 // pred_check
      _
    $region7: #{nonlearnable_cell_forward.1} parent=1 // pred_check_branch
      %20 = sbr.rel (0) target = $region9
    $region8: #{nonlearnable_cell_forward.1} parent=1 // pred_region
      %s22 = ssub.s32 1024, 1024
      %23 = vsyncadd [#allocation5], %s22
      %s24 = sshll.u32 [#allocation4], 4
      %s25 = int_to_ptr.vmem [resolvable:$true] %s24
      %30 = dma.hbm_to_vmem [thread:$0]  %s1, 1024, %s25, [#allocation5], 128, 128, 8
    $region9: #{nonlearnable_cell_forward.1} parent=1 // pred_fallthru
      _
    // Predicated region
    $region10: #{nonlearnable_cell_forward.1} parent=1 // pred_check
      _
    $region11: #{nonlearnable_cell_forward.1} parent=1 // pred_check_branch
      %32 = sbr.rel (0) target = $region13
    $region12: #{nonlearnable_cell_forward.1} parent=1 // pred_region
      %s34 = ssub.s32 2048, 2048
      %35 = vsyncadd [#allocation8], %s34
      %s36 = sshll.u32 [#allocation7], 4
      %s37 = int_to_ptr.vmem [resolvable:$true] %s36
      %42 = dma.hbm_to_vmem [thread:$0]  %s2, 2048, %s37, [#allocation8], 128, 128, 8
    $region13: #{nonlearnable_cell_forward.1} parent=1 // pred_fallthru
      _
    // Predicated region
    $region14: #{nonlearnable_cell_forward.1} parent=1 // pred_check
      _
    $region15: #{nonlearnable_cell_forward.1} parent=1 // pred_check_branch
      %44 = sbr.rel (0) target = $region17
    $region16: #{nonlearnable_cell_forward.1} parent=1 // pred_region
      _
    $region17: #{nonlearnable_cell_forward.1} parent=1 // pred_fallthru
      _
    // Predicated region
    $region18: #{nonlearnable_cell_forward.1} parent=1 // pred_check
      _
    $region19: #{nonlearnable_cell_forward.1} parent=1 // pred_check_branch
      %46 = sbr.rel (0) target = $region21
    $region20: #{nonlearnable_cell_forward.1} parent=1 // pred_region
      _
    $region21: #{nonlearnable_cell_forward.1} parent=1 // pred_fallthru
      _
    // Predicated region
    $region22: #{nonlearnable_cell_forward.1} parent=1 // pred_check
      _
    $region23: #{nonlearnable_cell_forward.1} parent=1 // pred_check_branch
      %48 = sbr.rel (0) target = $region25
    $region24: #{nonlearnable_cell_forward.1} parent=1 // pred_region
      %s50 = ssub.s32 64, 64
      %51 = vsyncadd [#allocation8], %s50
      %s52 = sshll.u32 [#allocation9], 4
      %s53 = int_to_ptr.vmem [resolvable:$true] %s52
      %58 = dma.hbm_to_vmem [thread:$0]  %s5, 64, %s53, [#allocation8], 16, 16, 1
    $region25: #{nonlearnable_cell_forward.1} parent=1 // pred_fallthru
      _
    // Predicated region
    $region26: #{nonlearnable_cell_forward.1} parent=1 // pred_check
      _
    $region27: #{nonlearnable_cell_forward.1} parent=1 // pred_check_branch
      %60 = sbr.rel (0) target = $region29
    $region28: #{nonlearnable_cell_forward.1} parent=1 // pred_region
      %61 = dma.done [#allocation5], 1024
    $region29: #{nonlearnable_cell_forward.1} parent=1 // pred_fallthru
      _
    // Predicated region
    $region30: #{nonlearnable_cell_forward.1} parent=1 // pred_check
      _
    $region31: #{nonlearnable_cell_forward.1} parent=1 // pred_check_branch
      %63 = sbr.rel (0) target = $region33
    $region32: #{nonlearnable_cell_forward.1} parent=1 // pred_region
      %64 = dma.done [#allocation8], 2048
    $region33: #{nonlearnable_cell_forward.1} parent=1 // pred_fallthru
      _
    // Predicated region
    $region34: #{nonlearnable_cell_forward.1} parent=1 // pred_check
      _
    $region35: #{nonlearnable_cell_forward.1} parent=1 // pred_check_branch
      %66 = sbr.rel (0) target = $region37
    $region36: #{nonlearnable_cell_forward.1} parent=1 // pred_region
      %67 = dma.done [#allocation8], 64
    $region37: #{nonlearnable_cell_forward.1} parent=1 // pred_fallthru
      _
    %v68 = vld [vmem:[%s0] sm:$0xff]
    %v69 = vld [vmem:[#allocation4] sm:$0xff]
    %v70 = vld [vmem:[#allocation4 + $0x8] sm:$0xff]
    %v71 = vld [vmem:[%s3] sm:$0x1]
    %v73 = vlaneseq
    %v74 = vshrl.u32 %v73, 7
    %v75 = vsub.s32 0, %v74
    %v76 = vrot.slane %v71, %v75
    %vm78 = vcmask 130048
    %v80 = vsel %vm78, %v68, 0
    %82 = vmatprep.subr.mxu0 0.0
    %83 = vmatpush1.msra.mxu0 %v69
    %84 = vmatprep.subr.mxu0 0.0
    %85 = vmatpush1.msra.mxu0 %v70
    %86 = vmatprep.subr.mxu0 0.0
    %87 = vmatpush1.msra.mxu0 0.0
    %88 = vmatprep.subr.mxu0 0.0
    %89 = vmatpush1.msra.mxu0 0.0
    %90 = vmatprep.subr.mxu0 0.0
    %91 = vmatpush1.msra.mxu0 0.0
    %92 = vmatprep.subr.mxu0 0.0
    %93 = vmatpush1.msra.mxu0 0.0
    %94 = vmatprep.subr.mxu0 0.0
    %95 = vmatpush1.msra.mxu0 0.0
    %96 = vmatprep.subr.mxu0 0.0
    %97 = vmatpush1.msra.mxu0 0.0
    %98 = vmatprep.subr.mxu0 0.0
    %99 = vmatpush1.msra.mxu0 0.0
    %100 = vmatprep.subr.mxu0 0.0
    %101 = vmatpush1.msra.mxu0 0.0
    %102 = vmatprep.subr.mxu0 0.0
    %103 = vmatpush1.msra.mxu0 0.0
    %104 = vmatprep.subr.mxu0 0.0
    %105 = vmatpush1.msra.mxu0 0.0
    %106 = vmatprep.subr.mxu0 0.0
    %107 = vmatpush1.msra.mxu0 0.0
    %108 = vmatprep.subr.mxu0 0.0
    %109 = vmatpush1.msra.mxu0 0.0
    %110 = vmatprep.subr.mxu0 0.0
    %111 = vmatpush1.msra.mxu0 0.0
    %112 = vmatprep.subr.mxu0 0.0
    %113 = vmatpush1.msra.mxu0 0.0
    %114 = vmatprep.subr.mxu0 0.0
    %115 = vmatpush1.msra.mxu0 0.0
    %116 = vmatprep.subr.mxu0 0.0
    %117 = vmatpush1.msra.mxu0 0.0
    %118 = vmatprep.subr.mxu0 0.0
    %119 = vmatpush1.msra.mxu0 0.0
    %120 = vmatprep.subr.mxu0 0.0
    %121 = vmatpush1.msra.mxu0 0.0
    %122 = vmatprep.subr.mxu0 0.0
    %123 = vmatpush1.msra.mxu0 0.0
    %124 = vmatprep.subr.mxu0 0.0
    %125 = vmatpush1.msra.mxu0 0.0
    %126 = vmatprep.subr.mxu0 0.0
    %127 = vmatpush1.msra.mxu0 0.0
    %128 = vmatprep.subr.mxu0 0.0
    %129 = vmatpush1.msra.mxu0 0.0
    %130 = vmatprep.subr.mxu0 0.0
    %131 = vmatpush1.msra.mxu0 0.0
    %132 = vmatprep.subr.mxu0 0.0
    %133 = vmatpush1.msra.mxu0 0.0
    %134 = vmatprep.subr.mxu0 0.0
    %135 = vmatpush1.msra.mxu0 0.0
    %136 = vmatprep.subr.mxu0 0.0
    %137 = vmatpush1.msra.mxu0 0.0
    %138 = vmatprep.subr.mxu0 0.0
    %139 = vmatpush1.msra.mxu0 0.0
    %140 = vmatprep.subr.mxu0 0.0
    %141 = vmatpush1.msra.mxu0 0.0
    %142 = vmatprep.subr.mxu0 0.0
    %143 = vmatpush1.msra.mxu0 0.0
    %144 = vmatprep.subr.mxu0 0.0
    %145 = vmatpush1.msra.mxu0 0.0
    %146 = vmatprep.mubr.f32.mxu0 0.0
    %147 = vmatmul.mubr.f32.gmra.mrb[0].mxu0 %v80
    %v148 = vpop.f32.mrb[0].mxu0
    %v149 = vadd.f32 %v76, %v148
    %v150 = vpop.f32.mrb[0].mxu0
    %151 = vdwg.mxu0
    %vm152 = vcmask 785408
    %153 = vst.msk [vmem:[#allocation2] sm:$0xff] %vm152, %v149
    %s154 = scalar_lea.vmem %s0, 8
    %v155 = vld [vmem:[%s154] sm:$0xff]
    %s156 = scalar_lea.vmem [#allocation4], 16
    %v157 = vld [vmem:[%s156] sm:$0xff]
    %v158 = vld [vmem:[%s156 + $0x8] sm:$0xff]
    %s159 = scalar_lea.vmem %s3, 1
    %v160 = vld [vmem:[%s159] sm:$0x1]
    %v162 = vlaneseq
    %v163 = vshrl.u32 %v162, 7
    %v164 = vsub.s32 0, %v163
    %v165 = vrot.slane %v160, %v164
    %v168 = vsel %vm78, %v155, 0
    %170 = vmatprep.subr.mxu0 0.0
    %171 = vmatpush1.msra.mxu0 %v157
    %172 = vmatprep.subr.mxu0 0.0
    %173 = vmatpush1.msra.mxu0 %v158
    %174 = vmatprep.subr.mxu0 0.0
    %175 = vmatpush1.msra.mxu0 0.0
    %176 = vmatprep.subr.mxu0 0.0
    %177 = vmatpush1.msra.mxu0 0.0
    %178 = vmatprep.subr.mxu0 0.0
    %179 = vmatpush1.msra.mxu0 0.0
    %180 = vmatprep.subr.mxu0 0.0
    %181 = vmatpush1.msra.mxu0 0.0
    %182 = vmatprep.subr.mxu0 0.0
    %183 = vmatpush1.msra.mxu0 0.0
    %184 = vmatprep.subr.mxu0 0.0
    %185 = vmatpush1.msra.mxu0 0.0
    %186 = vmatprep.subr.mxu0 0.0
    %187 = vmatpush1.msra.mxu0 0.0
    %188 = vmatprep.subr.mxu0 0.0
    %189 = vmatpush1.msra.mxu0 0.0
    %190 = vmatprep.subr.mxu0 0.0
    %191 = vmatpush1.msra.mxu0 0.0
    %192 = vmatprep.subr.mxu0 0.0
    %193 = vmatpush1.msra.mxu0 0.0
    %194 = vmatprep.subr.mxu0 0.0
    %195 = vmatpush1.msra.mxu0 0.0
    %196 = vmatprep.subr.mxu0 0.0
    %197 = vmatpush1.msra.mxu0 0.0
    %198 = vmatprep.subr.mxu0 0.0
    %199 = vmatpush1.msra.mxu0 0.0
    %200 = vmatprep.subr.mxu0 0.0
    %201 = vmatpush1.msra.mxu0 0.0
    %202 = vmatprep.subr.mxu0 0.0
    %203 = vmatpush1.msra.mxu0 0.0
    %204 = vmatprep.subr.mxu0 0.0
    %205 = vmatpush1.msra.mxu0 0.0
    %206 = vmatprep.subr.mxu0 0.0
    %207 = vmatpush1.msra.mxu0 0.0
    %208 = vmatprep.subr.mxu0 0.0
    %209 = vmatpush1.msra.mxu0 0.0
    %210 = vmatprep.subr.mxu0 0.0
    %211 = vmatpush1.msra.mxu0 0.0
    %212 = vmatprep.subr.mxu0 0.0
    %213 = vmatpush1.msra.mxu0 0.0
    %214 = vmatprep.subr.mxu0 0.0
    %215 = vmatpush1.msra.mxu0 0.0
    %216 = vmatprep.subr.mxu0 0.0
    %217 = vmatpush1.msra.mxu0 0.0
    %218 = vmatprep.subr.mxu0 0.0
    %219 = vmatpush1.msra.mxu0 0.0
    %220 = vmatprep.subr.mxu0 0.0
    %221 = vmatpush1.msra.mxu0 0.0
    %222 = vmatprep.subr.mxu0 0.0
    %223 = vmatpush1.msra.mxu0 0.0
    %224 = vmatprep.subr.mxu0 0.0
    %225 = vmatpush1.msra.mxu0 0.0
    %226 = vmatprep.subr.mxu0 0.0
    %227 = vmatpush1.msra.mxu0 0.0
    %228 = vmatprep.subr.mxu0 0.0
    %229 = vmatpush1.msra.mxu0 0.0
    %230 = vmatprep.subr.mxu0 0.0
    %231 = vmatpush1.msra.mxu0 0.0
    %232 = vmatprep.subr.mxu0 0.0
    %233 = vmatpush1.msra.mxu0 0.0
    %234 = vmatprep.mubr.f32.mxu0 0.0
    %235 = vmatmul.mubr.f32.gmra.mrb[0].mxu0 %v168
    %v236 = vpop.f32.mrb[0].mxu0
    %v237 = vadd.f32 %v165, %v236
    %v238 = vpop.f32.mrb[0].mxu0
    %239 = vdwg.mxu0
    %s240 = scalar_lea.vmem [#allocation2], 8
    %241 = vst.msk [vmem:[%s240] sm:$0xff] %vm152, %v237
    %s242 = scalar_lea.vmem %s0, 16
    %v243 = vld [vmem:[%s242] sm:$0xff]
    %s244 = scalar_lea.vmem [#allocation4], 32
    %v245 = vld [vmem:[%s244] sm:$0xff]
    %v246 = vld [vmem:[%s244 + $0x8] sm:$0xff]
    %s247 = scalar_lea.vmem %s3, 2
    %v248 = vld [vmem:[%s247] sm:$0x1]
    %v250 = vlaneseq
    %v251 = vshrl.u32 %v250, 7
    %v252 = vsub.s32 0, %v251
    %v253 = vrot.slane %v248, %v252
    %v256 = vsel %vm78, %v243, 0
    %258 = vmatprep.subr.mxu0 0.0
    %259 = vmatpush1.msra.mxu0 %v245
    %260 = vmatprep.subr.mxu0 0.0
    %261 = vmatpush1.msra.mxu0 %v246
    %262 = vmatprep.subr.mxu0 0.0
    %263 = vmatpush1.msra.mxu0 0.0
    %264 = vmatprep.subr.mxu0 0.0
    %265 = vmatpush1.msra.mxu0 0.0
    %266 = vmatprep.subr.mxu0 0.0
    %267 = vmatpush1.msra.mxu0 0.0
    %268 = vmatprep.subr.mxu0 0.0
    %269 = vmatpush1.msra.mxu0 0.0
    %270 = vmatprep.subr.mxu0 0.0
    %271 = vmatpush1.msra.mxu0 0.0
    %272 = vmatprep.subr.mxu0 0.0
    %273 = vmatpush1.msra.mxu0 0.0
    %274 = vmatprep.subr.mxu0 0.0
    %275 = vmatpush1.msra.mxu0 0.0
    %276 = vmatprep.subr.mxu0 0.0
    %277 = vmatpush1.msra.mxu0 0.0
    %278 = vmatprep.subr.mxu0 0.0
    %279 = vmatpush1.msra.mxu0 0.0
    %280 = vmatprep.subr.mxu0 0.0
    %281 = vmatpush1.msra.mxu0 0.0
    %282 = vmatprep.subr.mxu0 0.0
    %283 = vmatpush1.msra.mxu0 0.0
    %284 = vmatprep.subr.mxu0 0.0
    %285 = vmatpush1.msra.mxu0 0.0
    %286 = vmatprep.subr.mxu0 0.0
    %287 = vmatpush1.msra.mxu0 0.0
    %288 = vmatprep.subr.mxu0 0.0
    %289 = vmatpush1.msra.mxu0 0.0
    %290 = vmatprep.subr.mxu0 0.0
    %291 = vmatpush1.msra.mxu0 0.0
    %292 = vmatprep.subr.mxu0 0.0
    %293 = vmatpush1.msra.mxu0 0.0
    %294 = vmatprep.subr.mxu0 0.0
    %295 = vmatpush1.msra.mxu0 0.0
    %296 = vmatprep.subr.mxu0 0.0
    %297 = vmatpush1.msra.mxu0 0.0
    %298 = vmatprep.subr.mxu0 0.0
    %299 = vmatpush1.msra.mxu0 0.0
    %300 = vmatprep.subr.mxu0 0.0
    %301 = vmatpush1.msra.mxu0 0.0
    %302 = vmatprep.subr.mxu0 0.0
    %303 = vmatpush1.msra.mxu0 0.0
    %304 = vmatprep.subr.mxu0 0.0
    %305 = vmatpush1.msra.mxu0 0.0
    %306 = vmatprep.subr.mxu0 0.0
    %307 = vmatpush1.msra.mxu0 0.0
    %308 = vmatprep.subr.mxu0 0.0
    %309 = vmatpush1.msra.mxu0 0.0
    %310 = vmatprep.subr.mxu0 0.0
    %311 = vmatpush1.msra.mxu0 0.0
    %312 = vmatprep.subr.mxu0 0.0
    %313 = vmatpush1.msra.mxu0 0.0
    %314 = vmatprep.subr.mxu0 0.0
    %315 = vmatpush1.msra.mxu0 0.0
    %316 = vmatprep.subr.mxu0 0.0
    %317 = vmatpush1.msra.mxu0 0.0
    %318 = vmatprep.subr.mxu0 0.0
    %319 = vmatpush1.msra.mxu0 0.0
    %320 = vmatprep.subr.mxu0 0.0
    %321 = vmatpush1.msra.mxu0 0.0
    %322 = vmatprep.mubr.f32.mxu0 0.0
    %323 = vmatmul.mubr.f32.gmra.mrb[0].mxu0 %v256
    %v324 = vpop.f32.mrb[0].mxu0
    %v325 = vadd.f32 %v253, %v324
    %v326 = vpop.f32.mrb[0].mxu0
    %327 = vdwg.mxu0
    %s328 = scalar_lea.vmem [#allocation2], 16
    %329 = vst.msk [vmem:[%s328] sm:$0xff] %vm152, %v325
    %s330 = scalar_lea.vmem %s0, 24
    %v331 = vld [vmem:[%s330] sm:$0xff]
    %s332 = scalar_lea.vmem [#allocation4], 48
    %v333 = vld [vmem:[%s332] sm:$0xff]
    %v334 = vld [vmem:[%s332 + $0x8] sm:$0xff]
    %s335 = scalar_lea.vmem %s3, 3
    %v336 = vld [vmem:[%s335] sm:$0x1]
    %v338 = vlaneseq
    %v339 = vshrl.u32 %v338, 7
    %v340 = vsub.s32 0, %v339
    %v341 = vrot.slane %v336, %v340
    %v344 = vsel %vm78, %v331, 0
    %346 = vmatprep.subr.mxu0 0.0
    %347 = vmatpush1.msra.mxu0 %v333
    %348 = vmatprep.subr.mxu0 0.0
    %349 = vmatpush1.msra.mxu0 %v334
    %350 = vmatprep.subr.mxu0 0.0
    %351 = vmatpush1.msra.mxu0 0.0
    %352 = vmatprep.subr.mxu0 0.0
    %353 = vmatpush1.msra.mxu0 0.0
    %354 = vmatprep.subr.mxu0 0.0
    %355 = vmatpush1.msra.mxu0 0.0
    %356 = vmatprep.subr.mxu0 0.0
    %357 = vmatpush1.msra.mxu0 0.0
    %358 = vmatprep.subr.mxu0 0.0
    %359 = vmatpush1.msra.mxu0 0.0
    %360 = vmatprep.subr.mxu0 0.0
    %361 = vmatpush1.msra.mxu0 0.0
    %362 = vmatprep.subr.mxu0 0.0
    %363 = vmatpush1.msra.mxu0 0.0
    %364 = vmatprep.subr.mxu0 0.0
    %365 = vmatpush1.msra.mxu0 0.0
    %366 = vmatprep.subr.mxu0 0.0
    %367 = vmatpush1.msra.mxu0 0.0
    %368 = vmatprep.subr.mxu0 0.0
    %369 = vmatpush1.msra.mxu0 0.0
    %370 = vmatprep.subr.mxu0 0.0
    %371 = vmatpush1.msra.mxu0 0.0
    %372 = vmatprep.subr.mxu0 0.0
    %373 = vmatpush1.msra.mxu0 0.0
    %374 = vmatprep.subr.mxu0 0.0
    %375 = vmatpush1.msra.mxu0 0.0
    %376 = vmatprep.subr.mxu0 0.0
    %377 = vmatpush1.msra.mxu0 0.0
    %378 = vmatprep.subr.mxu0 0.0
    %379 = vmatpush1.msra.mxu0 0.0
    %380 = vmatprep.subr.mxu0 0.0
    %381 = vmatpush1.msra.mxu0 0.0
    %382 = vmatprep.subr.mxu0 0.0
    %383 = vmatpush1.msra.mxu0 0.0
    %384 = vmatprep.subr.mxu0 0.0
    %385 = vmatpush1.msra.mxu0 0.0
    %386 = vmatprep.subr.mxu0 0.0
    %387 = vmatpush1.msra.mxu0 0.0
    %388 = vmatprep.subr.mxu0 0.0
    %389 = vmatpush1.msra.mxu0 0.0
    %390 = vmatprep.subr.mxu0 0.0
    %391 = vmatpush1.msra.mxu0 0.0
    %392 = vmatprep.subr.mxu0 0.0
    %393 = vmatpush1.msra.mxu0 0.0
    %394 = vmatprep.subr.mxu0 0.0
    %395 = vmatpush1.msra.mxu0 0.0
    %396 = vmatprep.subr.mxu0 0.0
    %397 = vmatpush1.msra.mxu0 0.0
    %398 = vmatprep.subr.mxu0 0.0
    %399 = vmatpush1.msra.mxu0 0.0
    %400 = vmatprep.subr.mxu0 0.0
    %401 = vmatpush1.msra.mxu0 0.0
    %402 = vmatprep.subr.mxu0 0.0
    %403 = vmatpush1.msra.mxu0 0.0
    %404 = vmatprep.subr.mxu0 0.0
    %405 = vmatpush1.msra.mxu0 0.0
    %406 = vmatprep.subr.mxu0 0.0
    %407 = vmatpush1.msra.mxu0 0.0
    %408 = vmatprep.subr.mxu0 0.0
    %409 = vmatpush1.msra.mxu0 0.0
    %410 = vmatprep.mubr.f32.mxu0 0.0
    %411 = vmatmul.mubr.f32.gmra.mrb[0].mxu0 %v344
    %v412 = vpop.f32.mrb[0].mxu0
    %v413 = vadd.f32 %v341, %v412
    %v414 = vpop.f32.mrb[0].mxu0
    %415 = vdwg.mxu0
    %s416 = scalar_lea.vmem [#allocation2], 24
    %417 = vst.msk [vmem:[%s416] sm:$0xff] %vm152, %v413
    %p418 = scmp.eq.s32.totalorder 0, 0
    // Predicated region
    $region38: #{nonlearnable_cell_forward.1} parent=1 // pred_check
      %p419 = pneg %p418
    $region39: #{nonlearnable_cell_forward.1} parent=1 // pred_check_branch
      %421 = sbr.rel (%p419) target = $region41
    $region40: #{nonlearnable_cell_forward.1} parent=1 // pred_region
      %v422 = vld [vmem:[#allocation9] sm:$0x1]
      %s423 = scalar_lea.vmem [#allocation9], 1
      %v424 = vld [vmem:[%s423] sm:$0x1]
      %s425 = scalar_lea.vmem [#allocation9], 2
      %v426 = vld [vmem:[%s425] sm:$0x1]
      %s427 = scalar_lea.vmem [#allocation9], 3
      %v428 = vld [vmem:[%s427] sm:$0x1]
      %v430 = vlaneseq
      %v431 = vshrl.u32 %v430, 7
      %v432 = vsub.s32 0, %v431
      %v433 = vrot.slane %v424, %v432
      %v436 = vlaneseq
      %v437 = vshrl.u32 %v436, 7
      %v438 = vsub.s32 0, %v437
      %v439 = vrot.slane %v426, %v438
      %v442 = vlaneseq
      %v443 = vshrl.u32 %v442, 7
      %v444 = vsub.s32 0, %v443
      %v445 = vrot.slane %v428, %v444
      %vm447 = vcmask 1040384
      %v448 = vsel %vm447, %v422, %v433
      %vm449 = vcmask 1041408
      %v450 = vsel %vm449, %v448, %v439
      %vm451 = vcmask 1042432
      %v452 = vsel %vm451, %v450, %v445
      %vm453 = vcmask 257024
      %454 = vst.msk [vmem:[#allocation3] sm:$0xf] %vm453, %v452
    $region41: #{nonlearnable_cell_forward.1} parent=1 // pred_fallthru
      _
    %v455 = vld [vmem:[%s4] sm:$0x1]
    %s456 = scalar_lea.vmem %s4, 1
    %v457 = vld [vmem:[%s456] sm:$0x1]
    %s458 = scalar_lea.vmem %s4, 2
    %v459 = vld [vmem:[%s458] sm:$0x1]
    %s460 = scalar_lea.vmem %s4, 3
    %v461 = vld [vmem:[%s460] sm:$0x1]
    %v463 = vlaneseq
    %v464 = vshrl.u32 %v463, 7
    %v465 = vsub.s32 0, %v464
    %v466 = vrot.slane %v457, %v465
    %v469 = vlaneseq
    %v470 = vshrl.u32 %v469, 7
    %v471 = vsub.s32 0, %v470
    %v472 = vrot.slane %v459, %v471
    %v475 = vlaneseq
    %v476 = vshrl.u32 %v475, 7
    %v477 = vsub.s32 0, %v476
    %v478 = vrot.slane %v461, %v477
    %vm480 = vcmask 1040384
    %v481 = vsel %vm480, %v455, %v466
    %vm482 = vcmask 1041408
    %v483 = vsel %vm482, %v481, %v472
    %vm484 = vcmask 1042432
    %v485 = vsel %vm484, %v483, %v478
    %v486 = vld [vmem:[#allocation3] sm:$0xf]
    loop: start=0, step=1, limit=2
    $region42: #{nonlearnable_cell_forward.1} parent=1 // loop_pre_header
      _
    $region43: #{nonlearnable_cell_forward.1} parent=1 // loop_header
      %s488 = sphi 0, %s492
      %p489 = scmp.ge.s32.totalorder %s488, 2
      %v493 = vphi %v486, %v1991
    $region44: #{nonlearnable_cell_forward.1} parent=1 // loop_header_branch
      %491 = sbr.rel (%p489) target = $region48
    $region45: #{nonlearnable_cell_forward.1} parent=1 // loop_body
      %s494 = smul.u32 %s488, 4
      %s495 = scalar_lea.vmem [#allocation2], %s494
      %v496 = vld [vmem:[%s495] sm:$0xf]
      %s497 = sadd.s32 %s494, 8
      %s498 = scalar_lea.vmem [#allocation2], %s497
      %v499 = vld [vmem:[%s498] sm:$0xf]
      %s500 = sadd.s32 %s494, 16
      %s501 = scalar_lea.vmem [#allocation2], %s500
      %v502 = vld [vmem:[%s501] sm:$0xf]
      %s503 = sadd.s32 %s494, 24
      %s504 = scalar_lea.vmem [#allocation2], %s503
      %v505 = vld [vmem:[%s504] sm:$0xf]
      %v506 = vld [vmem:[#allocation7] sm:$0xff]
      %v507 = vld [vmem:[#allocation7 + $0x8] sm:$0xff]
      %v508 = vld [vmem:[#allocation7 + $0x10] sm:$0xff]
      %v509 = vld [vmem:[#allocation7 + $0x18] sm:$0xff]
      %vm510 = vcmask 261120
      %v512 = vsel %vm510, %v493, 0
      %514 = vmatprep.subr.mxu0 0.0
      %515 = vmatpush1.msra.mxu0 %v506
      %516 = vmatprep.subr.mxu0 0.0
      %517 = vmatpush1.msra.mxu0 %v507
      %518 = vmatprep.subr.mxu0 0.0
      %519 = vmatpush1.msra.mxu0 %v508
      %520 = vmatprep.subr.mxu0 0.0
      %521 = vmatpush1.msra.mxu0 %v509
      %522 = vmatprep.subr.mxu0 0.0
      %523 = vmatpush1.msra.mxu0 0.0
      %524 = vmatprep.subr.mxu0 0.0
      %525 = vmatpush1.msra.mxu0 0.0
      %526 = vmatprep.subr.mxu0 0.0
      %527 = vmatpush1.msra.mxu0 0.0
      %528 = vmatprep.subr.mxu0 0.0
      %529 = vmatpush1.msra.mxu0 0.0
      %530 = vmatprep.subr.mxu0 0.0
      %531 = vmatpush1.msra.mxu0 0.0
      %532 = vmatprep.subr.mxu0 0.0
      %533 = vmatpush1.msra.mxu0 0.0
      %534 = vmatprep.subr.mxu0 0.0
      %535 = vmatpush1.msra.mxu0 0.0
      %536 = vmatprep.subr.mxu0 0.0
      %537 = vmatpush1.msra.mxu0 0.0
      %538 = vmatprep.subr.mxu0 0.0
      %539 = vmatpush1.msra.mxu0 0.0
      %540 = vmatprep.subr.mxu0 0.0
      %541 = vmatpush1.msra.mxu0 0.0
      %542 = vmatprep.subr.mxu0 0.0
      %543 = vmatpush1.msra.mxu0 0.0
      %544 = vmatprep.subr.mxu0 0.0
      %545 = vmatpush1.msra.mxu0 0.0
      %546 = vmatprep.subr.mxu0 0.0
      %547 = vmatpush1.msra.mxu0 0.0
      %548 = vmatprep.subr.mxu0 0.0
      %549 = vmatpush1.msra.mxu0 0.0
      %550 = vmatprep.subr.mxu0 0.0
      %551 = vmatpush1.msra.mxu0 0.0
      %552 = vmatprep.subr.mxu0 0.0
      %553 = vmatpush1.msra.mxu0 0.0
      %554 = vmatprep.subr.mxu0 0.0
      %555 = vmatpush1.msra.mxu0 0.0
      %556 = vmatprep.subr.mxu0 0.0
      %557 = vmatpush1.msra.mxu0 0.0
      %558 = vmatprep.subr.mxu0 0.0
      %559 = vmatpush1.msra.mxu0 0.0
      %560 = vmatprep.subr.mxu0 0.0
      %561 = vmatpush1.msra.mxu0 0.0
      %562 = vmatprep.subr.mxu0 0.0
      %563 = vmatpush1.msra.mxu0 0.0
      %564 = vmatprep.subr.mxu0 0.0
      %565 = vmatpush1.msra.mxu0 0.0
      %566 = vmatprep.subr.mxu0 0.0
      %567 = vmatpush1.msra.mxu0 0.0
      %568 = vmatprep.subr.mxu0 0.0
      %569 = vmatpush1.msra.mxu0 0.0
      %570 = vmatprep.subr.mxu0 0.0
      %571 = vmatpush1.msra.mxu0 0.0
      %572 = vmatprep.subr.mxu0 0.0
      %573 = vmatpush1.msra.mxu0 0.0
      %574 = vmatprep.subr.mxu0 0.0
      %575 = vmatpush1.msra.mxu0 0.0
      %576 = vmatprep.subr.mxu0 0.0
      %577 = vmatpush1.msra.mxu0 0.0
      %578 = vmatprep.mubr.f32.mxu0 0.0
      %579 = vmatmul.mubr.f32.gmra.mrb[0].mxu0 %v512
      %v580 = vpop.f32.mrb[0].mxu0
      %v581 = vadd.f32 0.0, %v580
      %v582 = vpop.f32.mrb[0].mxu0
      %583 = vdwg.mxu0
      %s584 = scalar_lea.vmem [#allocation7], 32
      %v585 = vld [vmem:[%s584] sm:$0xff]
      %v586 = vld [vmem:[%s584 + $0x8] sm:$0xff]
      %v587 = vld [vmem:[%s584 + $0x10] sm:$0xff]
      %v588 = vld [vmem:[%s584 + $0x18] sm:$0xff]
      %v589 = vrot.slane %v493, 1
      %v590 = vsel %vm510, %v589, 0
      %592 = vmatprep.subr.mxu0 0.0
      %593 = vmatpush1.msra.mxu0 %v585
      %594 = vmatprep.subr.mxu0 0.0
      %595 = vmatpush1.msra.mxu0 %v586
      %596 = vmatprep.subr.mxu0 0.0
      %597 = vmatpush1.msra.mxu0 %v587
      %598 = vmatprep.subr.mxu0 0.0
      %599 = vmatpush1.msra.mxu0 %v588
      %600 = vmatprep.subr.mxu0 0.0
      %601 = vmatpush1.msra.mxu0 0.0
      %602 = vmatprep.subr.mxu0 0.0
      %603 = vmatpush1.msra.mxu0 0.0
      %604 = vmatprep.subr.mxu0 0.0
      %605 = vmatpush1.msra.mxu0 0.0
      %606 = vmatprep.subr.mxu0 0.0
      %607 = vmatpush1.msra.mxu0 0.0
      %608 = vmatprep.subr.mxu0 0.0
      %609 = vmatpush1.msra.mxu0 0.0
      %610 = vmatprep.subr.mxu0 0.0
      %611 = vmatpush1.msra.mxu0 0.0
      %612 = vmatprep.subr.mxu0 0.0
      %613 = vmatpush1.msra.mxu0 0.0
      %614 = vmatprep.subr.mxu0 0.0
      %615 = vmatpush1.msra.mxu0 0.0
      %616 = vmatprep.subr.mxu0 0.0
      %617 = vmatpush1.msra.mxu0 0.0
      %618 = vmatprep.subr.mxu0 0.0
      %619 = vmatpush1.msra.mxu0 0.0
      %620 = vmatprep.subr.mxu0 0.0
      %621 = vmatpush1.msra.mxu0 0.0
      %622 = vmatprep.subr.mxu0 0.0
      %623 = vmatpush1.msra.mxu0 0.0
      %624 = vmatprep.subr.mxu0 0.0
      %625 = vmatpush1.msra.mxu0 0.0
      %626 = vmatprep.subr.mxu0 0.0
      %627 = vmatpush1.msra.mxu0 0.0
      %628 = vmatprep.subr.mxu0 0.0
      %629 = vmatpush1.msra.mxu0 0.0
      %630 = vmatprep.subr.mxu0 0.0
      %631 = vmatpush1.msra.mxu0 0.0
      %632 = vmatprep.subr.mxu0 0.0
      %633 = vmatpush1.msra.mxu0 0.0
      %634 = vmatprep.subr.mxu0 0.0
      %635 = vmatpush1.msra.mxu0 0.0
      %636 = vmatprep.subr.mxu0 0.0
      %637 = vmatpush1.msra.mxu0 0.0
      %638 = vmatprep.subr.mxu0 0.0
      %639 = vmatpush1.msra.mxu0 0.0
      %640 = vmatprep.subr.mxu0 0.0
      %641 = vmatpush1.msra.mxu0 0.0
      %642 = vmatprep.subr.mxu0 0.0
      %643 = vmatpush1.msra.mxu0 0.0
      %644 = vmatprep.subr.mxu0 0.0
      %645 = vmatpush1.msra.mxu0 0.0
      %646 = vmatprep.subr.mxu0 0.0
      %647 = vmatpush1.msra.mxu0 0.0
      %648 = vmatprep.subr.mxu0 0.0
      %649 = vmatpush1.msra.mxu0 0.0
      %650 = vmatprep.subr.mxu0 0.0
      %651 = vmatpush1.msra.mxu0 0.0
      %652 = vmatprep.subr.mxu0 0.0
      %653 = vmatpush1.msra.mxu0 0.0
      %654 = vmatprep.subr.mxu0 0.0
      %655 = vmatpush1.msra.mxu0 0.0
      %656 = vmatprep.mubr.f32.mxu0 0.0
      %657 = vmatmul.mubr.f32.gmra.mrb[0].mxu0 %v590
      %v658 = vpop.f32.mrb[0].mxu0
      %v659 = vadd.f32 0.0, %v658
      %v660 = vpop.f32.mrb[0].mxu0
      %661 = vdwg.mxu0
      %s662 = scalar_lea.vmem [#allocation7], 64
      %v663 = vld [vmem:[%s662] sm:$0xff]
      %v664 = vld [vmem:[%s662 + $0x8] sm:$0xff]
      %v665 = vld [vmem:[%s662 + $0x10] sm:$0xff]
      %v666 = vld [vmem:[%s662 + $0x18] sm:$0xff]
      %v667 = vrot.slane %v493, 2
      %v668 = vsel %vm510, %v667, 0
      %670 = vmatprep.subr.mxu0 0.0
      %671 = vmatpush1.msra.mxu0 %v663
      %672 = vmatprep.subr.mxu0 0.0
      %673 = vmatpush1.msra.mxu0 %v664
      %674 = vmatprep.subr.mxu0 0.0
      %675 = vmatpush1.msra.mxu0 %v665
      %676 = vmatprep.subr.mxu0 0.0
      %677 = vmatpush1.msra.mxu0 %v666
      %678 = vmatprep.subr.mxu0 0.0
      %679 = vmatpush1.msra.mxu0 0.0
      %680 = vmatprep.subr.mxu0 0.0
      %681 = vmatpush1.msra.mxu0 0.0
      %682 = vmatprep.subr.mxu0 0.0
      %683 = vmatpush1.msra.mxu0 0.0
      %684 = vmatprep.subr.mxu0 0.0
      %685 = vmatpush1.msra.mxu0 0.0
      %686 = vmatprep.subr.mxu0 0.0
      %687 = vmatpush1.msra.mxu0 0.0
      %688 = vmatprep.subr.mxu0 0.0
      %689 = vmatpush1.msra.mxu0 0.0
      %690 = vmatprep.subr.mxu0 0.0
      %691 = vmatpush1.msra.mxu0 0.0
      %692 = vmatprep.subr.mxu0 0.0
      %693 = vmatpush1.msra.mxu0 0.0
      %694 = vmatprep.subr.mxu0 0.0
      %695 = vmatpush1.msra.mxu0 0.0
      %696 = vmatprep.subr.mxu0 0.0
      %697 = vmatpush1.msra.mxu0 0.0
      %698 = vmatprep.subr.mxu0 0.0
      %699 = vmatpush1.msra.mxu0 0.0
      %700 = vmatprep.subr.mxu0 0.0
      %701 = vmatpush1.msra.mxu0 0.0
      %702 = vmatprep.subr.mxu0 0.0
      %703 = vmatpush1.msra.mxu0 0.0
      %704 = vmatprep.subr.mxu0 0.0
      %705 = vmatpush1.msra.mxu0 0.0
      %706 = vmatprep.subr.mxu0 0.0
      %707 = vmatpush1.msra.mxu0 0.0
      %708 = vmatprep.subr.mxu0 0.0
      %709 = vmatpush1.msra.mxu0 0.0
      %710 = vmatprep.subr.mxu0 0.0
      %711 = vmatpush1.msra.mxu0 0.0
      %712 = vmatprep.subr.mxu0 0.0
      %713 = vmatpush1.msra.mxu0 0.0
      %714 = vmatprep.subr.mxu0 0.0
      %715 = vmatpush1.msra.mxu0 0.0
      %716 = vmatprep.subr.mxu0 0.0
      %717 = vmatpush1.msra.mxu0 0.0
      %718 = vmatprep.subr.mxu0 0.0
      %719 = vmatpush1.msra.mxu0 0.0
      %720 = vmatprep.subr.mxu0 0.0
      %721 = vmatpush1.msra.mxu0 0.0
      %722 = vmatprep.subr.mxu0 0.0
      %723 = vmatpush1.msra.mxu0 0.0
      %724 = vmatprep.subr.mxu0 0.0
      %725 = vmatpush1.msra.mxu0 0.0
      %726 = vmatprep.subr.mxu0 0.0
      %727 = vmatpush1.msra.mxu0 0.0
      %728 = vmatprep.subr.mxu0 0.0
      %729 = vmatpush1.msra.mxu0 0.0
      %730 = vmatprep.subr.mxu0 0.0
      %731 = vmatpush1.msra.mxu0 0.0
      %732 = vmatprep.subr.mxu0 0.0
      %733 = vmatpush1.msra.mxu0 0.0
      %734 = vmatprep.mubr.f32.mxu0 0.0
      %735 = vmatmul.mubr.f32.gmra.mrb[0].mxu0 %v668
      %v736 = vpop.f32.mrb[0].mxu0
      %v737 = vadd.f32 0.0, %v736
      %v738 = vpop.f32.mrb[0].mxu0
      %739 = vdwg.mxu0
      %s740 = scalar_lea.vmem [#allocation7], 96
      %v741 = vld [vmem:[%s740] sm:$0xff]
      %v742 = vld [vmem:[%s740 + $0x8] sm:$0xff]
      %v743 = vld [vmem:[%s740 + $0x10] sm:$0xff]
      %v744 = vld [vmem:[%s740 + $0x18] sm:$0xff]
      %v745 = vrot.slane %v493, 3
      %v746 = vsel %vm510, %v745, 0
      %748 = vmatprep.subr.mxu0 0.0
      %749 = vmatpush1.msra.mxu0 %v741
      %750 = vmatprep.subr.mxu0 0.0
      %751 = vmatpush1.msra.mxu0 %v742
      %752 = vmatprep.subr.mxu0 0.0
      %753 = vmatpush1.msra.mxu0 %v743
      %754 = vmatprep.subr.mxu0 0.0
      %755 = vmatpush1.msra.mxu0 %v744
      %756 = vmatprep.subr.mxu0 0.0
      %757 = vmatpush1.msra.mxu0 0.0
      %758 = vmatprep.subr.mxu0 0.0
      %759 = vmatpush1.msra.mxu0 0.0
      %760 = vmatprep.subr.mxu0 0.0
      %761 = vmatpush1.msra.mxu0 0.0
      %762 = vmatprep.subr.mxu0 0.0
      %763 = vmatpush1.msra.mxu0 0.0
      %764 = vmatprep.subr.mxu0 0.0
      %765 = vmatpush1.msra.mxu0 0.0
      %766 = vmatprep.subr.mxu0 0.0
      %767 = vmatpush1.msra.mxu0 0.0
      %768 = vmatprep.subr.mxu0 0.0
      %769 = vmatpush1.msra.mxu0 0.0
      %770 = vmatprep.subr.mxu0 0.0
      %771 = vmatpush1.msra.mxu0 0.0
      %772 = vmatprep.subr.mxu0 0.0
      %773 = vmatpush1.msra.mxu0 0.0
      %774 = vmatprep.subr.mxu0 0.0
      %775 = vmatpush1.msra.mxu0 0.0
      %776 = vmatprep.subr.mxu0 0.0
      %777 = vmatpush1.msra.mxu0 0.0
      %778 = vmatprep.subr.mxu0 0.0
      %779 = vmatpush1.msra.mxu0 0.0
      %780 = vmatprep.subr.mxu0 0.0
      %781 = vmatpush1.msra.mxu0 0.0
      %782 = vmatprep.subr.mxu0 0.0
      %783 = vmatpush1.msra.mxu0 0.0
      %784 = vmatprep.subr.mxu0 0.0
      %785 = vmatpush1.msra.mxu0 0.0
      %786 = vmatprep.subr.mxu0 0.0
      %787 = vmatpush1.msra.mxu0 0.0
      %788 = vmatprep.subr.mxu0 0.0
      %789 = vmatpush1.msra.mxu0 0.0
      %790 = vmatprep.subr.mxu0 0.0
      %791 = vmatpush1.msra.mxu0 0.0
      %792 = vmatprep.subr.mxu0 0.0
      %793 = vmatpush1.msra.mxu0 0.0
      %794 = vmatprep.subr.mxu0 0.0
      %795 = vmatpush1.msra.mxu0 0.0
      %796 = vmatprep.subr.mxu0 0.0
      %797 = vmatpush1.msra.mxu0 0.0
      %798 = vmatprep.subr.mxu0 0.0
      %799 = vmatpush1.msra.mxu0 0.0
      %800 = vmatprep.subr.mxu0 0.0
      %801 = vmatpush1.msra.mxu0 0.0
      %802 = vmatprep.subr.mxu0 0.0
      %803 = vmatpush1.msra.mxu0 0.0
      %804 = vmatprep.subr.mxu0 0.0
      %805 = vmatpush1.msra.mxu0 0.0
      %806 = vmatprep.subr.mxu0 0.0
      %807 = vmatpush1.msra.mxu0 0.0
      %808 = vmatprep.subr.mxu0 0.0
      %809 = vmatpush1.msra.mxu0 0.0
      %810 = vmatprep.subr.mxu0 0.0
      %811 = vmatpush1.msra.mxu0 0.0
      %812 = vmatprep.mubr.f32.mxu0 0.0
      %813 = vmatmul.mubr.f32.gmra.mrb[0].mxu0 %v746
      %v814 = vpop.f32.mrb[0].mxu0
      %v815 = vadd.f32 0.0, %v814
      %v816 = vpop.f32.mrb[0].mxu0
      %817 = vdwg.mxu0
      %v819 = vrot.slane %v659, 7
      %v822 = vrot.slane %v737, 6
      %v825 = vrot.slane %v815, 5
      %v827 = vsel %vm480, %v581, %v819
      %v828 = vsel %vm482, %v827, %v822
      %v829 = vsel %vm484, %v828, %v825
      %v831 = vrot.slane %v499, 7
      %v834 = vrot.slane %v502, 6
      %v837 = vrot.slane %v505, 5
      %v839 = vsel %vm480, %v496, %v831
      %v840 = vsel %vm482, %v839, %v834
      %v841 = vsel %vm484, %v840, %v837
      %v842 = vadd.f32 %v841, %v829
      %v843 = vxor.u32 %v842, 2147483648
      %v844 = vmul.f32 %v843, 1.442695
      %v845 = vpow.pop %v844
      %v846 = vadd.f32 %v845, 1.0
      %v847 = vrcp.pop %v846
      %v848 = vmul.f32 1.0, %v847
      %850 = vrot.lane.b32.xlu0 %v485, 64
      %v851 = vpop.permute.xlu0 %850
      %v853 = vadd.f32 %v829, %v851
      %855 = vrot.lane.b32.xlu0 %v853, 64
      %v856 = vpop.permute.xlu0 %855
      %v858 = vmul.f32 %v848, %v856
      %860 = vrot.lane.b32.xlu0 %v858, 64
      %v861 = vpop.permute.xlu0 %860
      %v863 = vadd.f32 %v841, %v861
      %v864 = vtanh.pop %v863
      %866 = vrot.lane.b32.xlu0 %v864, 64
      %v867 = vpop.permute.xlu0 %866
      %v869 = vsub.f32 %v493, %v867
      %871 = vrot.lane.b32.xlu0 %v869, 32
      %v872 = vpop.permute.xlu0 %871
      %v874 = vmul.f32 %v848, %v872
      %876 = vrot.lane.b32.xlu0 %v874, 32
      %v877 = vpop.permute.xlu0 %876
      %v879 = vadd.f32 %v864, %v877
      %881 = vrot.lane.b32.xlu0 %v879, 64
      %v882 = vpop.permute.xlu0 %881
      %v883 = vsel %vm510, %v882, 0
      %885 = vmatprep.subr.mxu0 0.0
      %886 = vmatpush1.msra.mxu0 %v506
      %887 = vmatprep.subr.mxu0 0.0
      %888 = vmatpush1.msra.mxu0 %v507
      %889 = vmatprep.subr.mxu0 0.0
      %890 = vmatpush1.msra.mxu0 %v508
      %891 = vmatprep.subr.mxu0 0.0
      %892 = vmatpush1.msra.mxu0 %v509
      %893 = vmatprep.subr.mxu0 0.0
      %894 = vmatpush1.msra.mxu0 0.0
      %895 = vmatprep.subr.mxu0 0.0
      %896 = vmatpush1.msra.mxu0 0.0
      %897 = vmatprep.subr.mxu0 0.0
      %898 = vmatpush1.msra.mxu0 0.0
      %899 = vmatprep.subr.mxu0 0.0
      %900 = vmatpush1.msra.mxu0 0.0
      %901 = vmatprep.subr.mxu0 0.0
      %902 = vmatpush1.msra.mxu0 0.0
      %903 = vmatprep.subr.mxu0 0.0
      %904 = vmatpush1.msra.mxu0 0.0
      %905 = vmatprep.subr.mxu0 0.0
      %906 = vmatpush1.msra.mxu0 0.0
      %907 = vmatprep.subr.mxu0 0.0
      %908 = vmatpush1.msra.mxu0 0.0
      %909 = vmatprep.subr.mxu0 0.0
      %910 = vmatpush1.msra.mxu0 0.0
      %911 = vmatprep.subr.mxu0 0.0
      %912 = vmatpush1.msra.mxu0 0.0
      %913 = vmatprep.subr.mxu0 0.0
      %914 = vmatpush1.msra.mxu0 0.0
      %915 = vmatprep.subr.mxu0 0.0
      %916 = vmatpush1.msra.mxu0 0.0
      %917 = vmatprep.subr.mxu0 0.0
      %918 = vmatpush1.msra.mxu0 0.0
      %919 = vmatprep.subr.mxu0 0.0
      %920 = vmatpush1.msra.mxu0 0.0
      %921 = vmatprep.subr.mxu0 0.0
      %922 = vmatpush1.msra.mxu0 0.0
      %923 = vmatprep.subr.mxu0 0.0
      %924 = vmatpush1.msra.mxu0 0.0
      %925 = vmatprep.subr.mxu0 0.0
      %926 = vmatpush1.msra.mxu0 0.0
      %927 = vmatprep.subr.mxu0 0.0
      %928 = vmatpush1.msra.mxu0 0.0
      %929 = vmatprep.subr.mxu0 0.0
      %930 = vmatpush1.msra.mxu0 0.0
      %931 = vmatprep.subr.mxu0 0.0
      %932 = vmatpush1.msra.mxu0 0.0
      %933 = vmatprep.subr.mxu0 0.0
      %934 = vmatpush1.msra.mxu0 0.0
      %935 = vmatprep.subr.mxu0 0.0
      %936 = vmatpush1.msra.mxu0 0.0
      %937 = vmatprep.subr.mxu0 0.0
      %938 = vmatpush1.msra.mxu0 0.0
      %939 = vmatprep.subr.mxu0 0.0
      %940 = vmatpush1.msra.mxu0 0.0
      %941 = vmatprep.subr.mxu0 0.0
      %942 = vmatpush1.msra.mxu0 0.0
      %943 = vmatprep.subr.mxu0 0.0
      %944 = vmatpush1.msra.mxu0 0.0
      %945 = vmatprep.subr.mxu0 0.0
      %946 = vmatpush1.msra.mxu0 0.0
      %947 = vmatprep.subr.mxu0 0.0
      %948 = vmatpush1.msra.mxu0 0.0
      %949 = vmatprep.mubr.f32.mxu0 0.0
      %950 = vmatmul.mubr.f32.gmra.mrb[0].mxu0 %v883
      %v951 = vpop.f32.mrb[0].mxu0
      %v952 = vadd.f32 0.0, %v951
      %v953 = vpop.f32.mrb[0].mxu0
      %954 = vdwg.mxu0
      %v955 = vrot.slane %v879, 1
      %956 = vrot.lane.b32.xlu0 %v955, 64
      %v957 = vpop.permute.xlu0 %956
      %v958 = vsel %vm510, %v957, 0
      %960 = vmatprep.subr.mxu0 0.0
      %961 = vmatpush1.msra.mxu0 %v585
      %962 = vmatprep.subr.mxu0 0.0
      %963 = vmatpush1.msra.mxu0 %v586
      %964 = vmatprep.subr.mxu0 0.0
      %965 = vmatpush1.msra.mxu0 %v587
      %966 = vmatprep.subr.mxu0 0.0
      %967 = vmatpush1.msra.mxu0 %v588
      %968 = vmatprep.subr.mxu0 0.0
      %969 = vmatpush1.msra.mxu0 0.0
      %970 = vmatprep.subr.mxu0 0.0
      %971 = vmatpush1.msra.mxu0 0.0
      %972 = vmatprep.subr.mxu0 0.0
      %973 = vmatpush1.msra.mxu0 0.0
      %974 = vmatprep.subr.mxu0 0.0
      %975 = vmatpush1.msra.mxu0 0.0
      %976 = vmatprep.subr.mxu0 0.0
      %977 = vmatpush1.msra.mxu0 0.0
      %978 = vmatprep.subr.mxu0 0.0
      %979 = vmatpush1.msra.mxu0 0.0
      %980 = vmatprep.subr.mxu0 0.0
      %981 = vmatpush1.msra.mxu0 0.0
      %982 = vmatprep.subr.mxu0 0.0
      %983 = vmatpush1.msra.mxu0 0.0
      %984 = vmatprep.subr.mxu0 0.0
      %985 = vmatpush1.msra.mxu0 0.0
      %986 = vmatprep.subr.mxu0 0.0
      %987 = vmatpush1.msra.mxu0 0.0
      %988 = vmatprep.subr.mxu0 0.0
      %989 = vmatpush1.msra.mxu0 0.0
      %990 = vmatprep.subr.mxu0 0.0
      %991 = vmatpush1.msra.mxu0 0.0
      %992 = vmatprep.subr.mxu0 0.0
      %993 = vmatpush1.msra.mxu0 0.0
      %994 = vmatprep.subr.mxu0 0.0
      %995 = vmatpush1.msra.mxu0 0.0
      %996 = vmatprep.subr.mxu0 0.0
      %997 = vmatpush1.msra.mxu0 0.0
      %998 = vmatprep.subr.mxu0 0.0
      %999 = vmatpush1.msra.mxu0 0.0
      %1000 = vmatprep.subr.mxu0 0.0
      %1001 = vmatpush1.msra.mxu0 0.0
      %1002 = vmatprep.subr.mxu0 0.0
      %1003 = vmatpush1.msra.mxu0 0.0
      %1004 = vmatprep.subr.mxu0 0.0
      %1005 = vmatpush1.msra.mxu0 0.0
      %1006 = vmatprep.subr.mxu0 0.0
      %1007 = vmatpush1.msra.mxu0 0.0
      %1008 = vmatprep.subr.mxu0 0.0
      %1009 = vmatpush1.msra.mxu0 0.0
      %1010 = vmatprep.subr.mxu0 0.0
      %1011 = vmatpush1.msra.mxu0 0.0
      %1012 = vmatprep.subr.mxu0 0.0
      %1013 = vmatpush1.msra.mxu0 0.0
      %1014 = vmatprep.subr.mxu0 0.0
      %1015 = vmatpush1.msra.mxu0 0.0
      %1016 = vmatprep.subr.mxu0 0.0
      %1017 = vmatpush1.msra.mxu0 0.0
      %1018 = vmatprep.subr.mxu0 0.0
      %1019 = vmatpush1.msra.mxu0 0.0
      %1020 = vmatprep.subr.mxu0 0.0
      %1021 = vmatpush1.msra.mxu0 0.0
      %1022 = vmatprep.subr.mxu0 0.0
      %1023 = vmatpush1.msra.mxu0 0.0
      %1024 = vmatprep.mubr.f32.mxu0 0.0
      %1025 = vmatmul.mubr.f32.gmra.mrb[0].mxu0 %v958
      %v1026 = vpop.f32.mrb[0].mxu0
      %v1027 = vadd.f32 0.0, %v1026
      %v1028 = vpop.f32.mrb[0].mxu0
      %1029 = vdwg.mxu0
      %v1030 = vrot.slane %v879, 2
      %1031 = vrot.lane.b32.xlu0 %v1030, 64
      %v1032 = vpop.permute.xlu0 %1031
      %v1033 = vsel %vm510, %v1032, 0
      %1035 = vmatprep.subr.mxu0 0.0
      %1036 = vmatpush1.msra.mxu0 %v663
      %1037 = vmatprep.subr.mxu0 0.0
      %1038 = vmatpush1.msra.mxu0 %v664
      %1039 = vmatprep.subr.mxu0 0.0
      %1040 = vmatpush1.msra.mxu0 %v665
      %1041 = vmatprep.subr.mxu0 0.0
      %1042 = vmatpush1.msra.mxu0 %v666
      %1043 = vmatprep.subr.mxu0 0.0
      %1044 = vmatpush1.msra.mxu0 0.0
      %1045 = vmatprep.subr.mxu0 0.0
      %1046 = vmatpush1.msra.mxu0 0.0
      %1047 = vmatprep.subr.mxu0 0.0
      %1048 = vmatpush1.msra.mxu0 0.0
      %1049 = vmatprep.subr.mxu0 0.0
      %1050 = vmatpush1.msra.mxu0 0.0
      %1051 = vmatprep.subr.mxu0 0.0
      %1052 = vmatpush1.msra.mxu0 0.0
      %1053 = vmatprep.subr.mxu0 0.0
      %1054 = vmatpush1.msra.mxu0 0.0
      %1055 = vmatprep.subr.mxu0 0.0
      %1056 = vmatpush1.msra.mxu0 0.0
      %1057 = vmatprep.subr.mxu0 0.0
      %1058 = vmatpush1.msra.mxu0 0.0
      %1059 = vmatprep.subr.mxu0 0.0
      %1060 = vmatpush1.msra.mxu0 0.0
      %1061 = vmatprep.subr.mxu0 0.0
      %1062 = vmatpush1.msra.mxu0 0.0
      %1063 = vmatprep.subr.mxu0 0.0
      %1064 = vmatpush1.msra.mxu0 0.0
      %1065 = vmatprep.subr.mxu0 0.0
      %1066 = vmatpush1.msra.mxu0 0.0
      %1067 = vmatprep.subr.mxu0 0.0
      %1068 = vmatpush1.msra.mxu0 0.0
      %1069 = vmatprep.subr.mxu0 0.0
      %1070 = vmatpush1.msra.mxu0 0.0
      %1071 = vmatprep.subr.mxu0 0.0
      %1072 = vmatpush1.msra.mxu0 0.0
      %1073 = vmatprep.subr.mxu0 0.0
      %1074 = vmatpush1.msra.mxu0 0.0
      %1075 = vmatprep.subr.mxu0 0.0
      %1076 = vmatpush1.msra.mxu0 0.0
      %1077 = vmatprep.subr.mxu0 0.0
      %1078 = vmatpush1.msra.mxu0 0.0
      %1079 = vmatprep.subr.mxu0 0.0
      %1080 = vmatpush1.msra.mxu0 0.0
      %1081 = vmatprep.subr.mxu0 0.0
      %1082 = vmatpush1.msra.mxu0 0.0
      %1083 = vmatprep.subr.mxu0 0.0
      %1084 = vmatpush1.msra.mxu0 0.0
      %1085 = vmatprep.subr.mxu0 0.0
      %1086 = vmatpush1.msra.mxu0 0.0
      %1087 = vmatprep.subr.mxu0 0.0
      %1088 = vmatpush1.msra.mxu0 0.0
      %1089 = vmatprep.subr.mxu0 0.0
      %1090 = vmatpush1.msra.mxu0 0.0
      %1091 = vmatprep.subr.mxu0 0.0
      %1092 = vmatpush1.msra.mxu0 0.0
      %1093 = vmatprep.subr.mxu0 0.0
      %1094 = vmatpush1.msra.mxu0 0.0
      %1095 = vmatprep.subr.mxu0 0.0
      %1096 = vmatpush1.msra.mxu0 0.0
      %1097 = vmatprep.subr.mxu0 0.0
      %1098 = vmatpush1.msra.mxu0 0.0
      %1099 = vmatprep.mubr.f32.mxu0 0.0
      %1100 = vmatmul.mubr.f32.gmra.mrb[0].mxu0 %v1033
      %v1101 = vpop.f32.mrb[0].mxu0
      %v1102 = vadd.f32 0.0, %v1101
      %v1103 = vpop.f32.mrb[0].mxu0
      %1104 = vdwg.mxu0
      %v1105 = vrot.slane %v879, 3
      %1106 = vrot.lane.b32.xlu0 %v1105, 64
      %v1107 = vpop.permute.xlu0 %1106
      %v1108 = vsel %vm510, %v1107, 0
      %1110 = vmatprep.subr.mxu0 0.0
      %1111 = vmatpush1.msra.mxu0 %v741
      %1112 = vmatprep.subr.mxu0 0.0
      %1113 = vmatpush1.msra.mxu0 %v742
      %1114 = vmatprep.subr.mxu0 0.0
      %1115 = vmatpush1.msra.mxu0 %v743
      %1116 = vmatprep.subr.mxu0 0.0
      %1117 = vmatpush1.msra.mxu0 %v744
      %1118 = vmatprep.subr.mxu0 0.0
      %1119 = vmatpush1.msra.mxu0 0.0
      %1120 = vmatprep.subr.mxu0 0.0
      %1121 = vmatpush1.msra.mxu0 0.0
      %1122 = vmatprep.subr.mxu0 0.0
      %1123 = vmatpush1.msra.mxu0 0.0
      %1124 = vmatprep.subr.mxu0 0.0
      %1125 = vmatpush1.msra.mxu0 0.0
      %1126 = vmatprep.subr.mxu0 0.0
      %1127 = vmatpush1.msra.mxu0 0.0
      %1128 = vmatprep.subr.mxu0 0.0
      %1129 = vmatpush1.msra.mxu0 0.0
      %1130 = vmatprep.subr.mxu0 0.0
      %1131 = vmatpush1.msra.mxu0 0.0
      %1132 = vmatprep.subr.mxu0 0.0
      %1133 = vmatpush1.msra.mxu0 0.0
      %1134 = vmatprep.subr.mxu0 0.0
      %1135 = vmatpush1.msra.mxu0 0.0
      %1136 = vmatprep.subr.mxu0 0.0
      %1137 = vmatpush1.msra.mxu0 0.0
      %1138 = vmatprep.subr.mxu0 0.0
      %1139 = vmatpush1.msra.mxu0 0.0
      %1140 = vmatprep.subr.mxu0 0.0
      %1141 = vmatpush1.msra.mxu0 0.0
      %1142 = vmatprep.subr.mxu0 0.0
      %1143 = vmatpush1.msra.mxu0 0.0
      %1144 = vmatprep.subr.mxu0 0.0
      %1145 = vmatpush1.msra.mxu0 0.0
      %1146 = vmatprep.subr.mxu0 0.0
      %1147 = vmatpush1.msra.mxu0 0.0
      %1148 = vmatprep.subr.mxu0 0.0
      %1149 = vmatpush1.msra.mxu0 0.0
      %1150 = vmatprep.subr.mxu0 0.0
      %1151 = vmatpush1.msra.mxu0 0.0
      %1152 = vmatprep.subr.mxu0 0.0
      %1153 = vmatpush1.msra.mxu0 0.0
      %1154 = vmatprep.subr.mxu0 0.0
      %1155 = vmatpush1.msra.mxu0 0.0
      %1156 = vmatprep.subr.mxu0 0.0
      %1157 = vmatpush1.msra.mxu0 0.0
      %1158 = vmatprep.subr.mxu0 0.0
      %1159 = vmatpush1.msra.mxu0 0.0
      %1160 = vmatprep.subr.mxu0 0.0
      %1161 = vmatpush1.msra.mxu0 0.0
      %1162 = vmatprep.subr.mxu0 0.0
      %1163 = vmatpush1.msra.mxu0 0.0
      %1164 = vmatprep.subr.mxu0 0.0
      %1165 = vmatpush1.msra.mxu0 0.0
      %1166 = vmatprep.subr.mxu0 0.0
      %1167 = vmatpush1.msra.mxu0 0.0
      %1168 = vmatprep.subr.mxu0 0.0
      %1169 = vmatpush1.msra.mxu0 0.0
      %1170 = vmatprep.subr.mxu0 0.0
      %1171 = vmatpush1.msra.mxu0 0.0
      %1172 = vmatprep.subr.mxu0 0.0
      %1173 = vmatpush1.msra.mxu0 0.0
      %1174 = vmatprep.mubr.f32.mxu0 0.0
      %1175 = vmatmul.mubr.f32.gmra.mrb[0].mxu0 %v1108
      %v1176 = vpop.f32.mrb[0].mxu0
      %v1177 = vadd.f32 0.0, %v1176
      %v1178 = vpop.f32.mrb[0].mxu0
      %1179 = vdwg.mxu0
      %v1181 = vrot.slane %v1027, 7
      %v1184 = vrot.slane %v1102, 6
      %v1187 = vrot.slane %v1177, 5
      %v1189 = vsel %vm480, %v952, %v1181
      %v1190 = vsel %vm482, %v1189, %v1184
      %v1191 = vsel %vm484, %v1190, %v1187
      %v1193 = vrot.slane %v496, 1
      %v1195 = vrot.slane %v502, 7
      %v1197 = vrot.slane %v505, 6
      %v1199 = vsel %vm480, %v1193, %v499
      %v1200 = vsel %vm482, %v1199, %v1195
      %v1201 = vsel %vm484, %v1200, %v1197
      %v1202 = vadd.f32 %v1201, %v1191
      %v1203 = vxor.u32 %v1202, 2147483648
      %v1204 = vmul.f32 %v1203, 1.442695
      %v1205 = vpow.pop %v1204
      %v1206 = vadd.f32 %v1205, 1.0
      %v1207 = vrcp.pop %v1206
      %v1208 = vmul.f32 1.0, %v1207
      %v1209 = vadd.f32 %v1191, %v851
      %1211 = vrot.lane.b32.xlu0 %v1209, 64
      %v1212 = vpop.permute.xlu0 %1211
      %v1214 = vmul.f32 %v1208, %v1212
      %1216 = vrot.lane.b32.xlu0 %v1214, 64
      %v1217 = vpop.permute.xlu0 %1216
      %v1219 = vadd.f32 %v1201, %v1217
      %v1220 = vtanh.pop %v1219
      %v1221 = vsub.f32 %v879, %v1220
      %1223 = vrot.lane.b32.xlu0 %v1221, 96
      %v1224 = vpop.permute.xlu0 %1223
      %v1226 = vmul.f32 %v1208, %v1224
      %1228 = vrot.lane.b32.xlu0 %v1226, 32
      %v1229 = vpop.permute.xlu0 %1228
      %v1231 = vadd.f32 %v1220, %v1229
      %1233 = vrot.lane.b32.xlu0 %v1231, 64
      %v1234 = vpop.permute.xlu0 %1233
      %v1235 = vsel %vm510, %v1234, 0
      %1237 = vmatprep.subr.mxu0 0.0
      %1238 = vmatpush1.msra.mxu0 %v506
      %1239 = vmatprep.subr.mxu0 0.0
      %1240 = vmatpush1.msra.mxu0 %v507
      %1241 = vmatprep.subr.mxu0 0.0
      %1242 = vmatpush1.msra.mxu0 %v508
      %1243 = vmatprep.subr.mxu0 0.0
      %1244 = vmatpush1.msra.mxu0 %v509
      %1245 = vmatprep.subr.mxu0 0.0
      %1246 = vmatpush1.msra.mxu0 0.0
      %1247 = vmatprep.subr.mxu0 0.0
      %1248 = vmatpush1.msra.mxu0 0.0
      %1249 = vmatprep.subr.mxu0 0.0
      %1250 = vmatpush1.msra.mxu0 0.0
      %1251 = vmatprep.subr.mxu0 0.0
      %1252 = vmatpush1.msra.mxu0 0.0
      %1253 = vmatprep.subr.mxu0 0.0
      %1254 = vmatpush1.msra.mxu0 0.0
      %1255 = vmatprep.subr.mxu0 0.0
      %1256 = vmatpush1.msra.mxu0 0.0
      %1257 = vmatprep.subr.mxu0 0.0
      %1258 = vmatpush1.msra.mxu0 0.0
      %1259 = vmatprep.subr.mxu0 0.0
      %1260 = vmatpush1.msra.mxu0 0.0
      %1261 = vmatprep.subr.mxu0 0.0
      %1262 = vmatpush1.msra.mxu0 0.0
      %1263 = vmatprep.subr.mxu0 0.0
      %1264 = vmatpush1.msra.mxu0 0.0
      %1265 = vmatprep.subr.mxu0 0.0
      %1266 = vmatpush1.msra.mxu0 0.0
      %1267 = vmatprep.subr.mxu0 0.0
      %1268 = vmatpush1.msra.mxu0 0.0
      %1269 = vmatprep.subr.mxu0 0.0
      %1270 = vmatpush1.msra.mxu0 0.0
      %1271 = vmatprep.subr.mxu0 0.0
      %1272 = vmatpush1.msra.mxu0 0.0
      %1273 = vmatprep.subr.mxu0 0.0
      %1274 = vmatpush1.msra.mxu0 0.0
      %1275 = vmatprep.subr.mxu0 0.0
      %1276 = vmatpush1.msra.mxu0 0.0
      %1277 = vmatprep.subr.mxu0 0.0
      %1278 = vmatpush1.msra.mxu0 0.0
      %1279 = vmatprep.subr.mxu0 0.0
      %1280 = vmatpush1.msra.mxu0 0.0
      %1281 = vmatprep.subr.mxu0 0.0
      %1282 = vmatpush1.msra.mxu0 0.0
      %1283 = vmatprep.subr.mxu0 0.0
      %1284 = vmatpush1.msra.mxu0 0.0
      %1285 = vmatprep.subr.mxu0 0.0
      %1286 = vmatpush1.msra.mxu0 0.0
      %1287 = vmatprep.subr.mxu0 0.0
      %1288 = vmatpush1.msra.mxu0 0.0
      %1289 = vmatprep.subr.mxu0 0.0
      %1290 = vmatpush1.msra.mxu0 0.0
      %1291 = vmatprep.subr.mxu0 0.0
      %1292 = vmatpush1.msra.mxu0 0.0
      %1293 = vmatprep.subr.mxu0 0.0
      %1294 = vmatpush1.msra.mxu0 0.0
      %1295 = vmatprep.subr.mxu0 0.0
      %1296 = vmatpush1.msra.mxu0 0.0
      %1297 = vmatprep.subr.mxu0 0.0
      %1298 = vmatpush1.msra.mxu0 0.0
      %1299 = vmatprep.subr.mxu0 0.0
      %1300 = vmatpush1.msra.mxu0 0.0
      %1301 = vmatprep.mubr.f32.mxu0 0.0
      %1302 = vmatmul.mubr.f32.gmra.mrb[0].mxu0 %v1235
      %v1303 = vpop.f32.mrb[0].mxu0
      %v1304 = vadd.f32 0.0, %v1303
      %v1305 = vpop.f32.mrb[0].mxu0
      %1306 = vdwg.mxu0
      %v1307 = vrot.slane %v1231, 1
      %1308 = vrot.lane.b32.xlu0 %v1307, 64
      %v1309 = vpop.permute.xlu0 %1308
      %v1310 = vsel %vm510, %v1309, 0
      %1312 = vmatprep.subr.mxu0 0.0
      %1313 = vmatpush1.msra.mxu0 %v585
      %1314 = vmatprep.subr.mxu0 0.0
      %1315 = vmatpush1.msra.mxu0 %v586
      %1316 = vmatprep.subr.mxu0 0.0
      %1317 = vmatpush1.msra.mxu0 %v587
      %1318 = vmatprep.subr.mxu0 0.0
      %1319 = vmatpush1.msra.mxu0 %v588
      %1320 = vmatprep.subr.mxu0 0.0
      %1321 = vmatpush1.msra.mxu0 0.0
      %1322 = vmatprep.subr.mxu0 0.0
      %1323 = vmatpush1.msra.mxu0 0.0
      %1324 = vmatprep.subr.mxu0 0.0
      %1325 = vmatpush1.msra.mxu0 0.0
      %1326 = vmatprep.subr.mxu0 0.0
      %1327 = vmatpush1.msra.mxu0 0.0
      %1328 = vmatprep.subr.mxu0 0.0
      %1329 = vmatpush1.msra.mxu0 0.0
      %1330 = vmatprep.subr.mxu0 0.0
      %1331 = vmatpush1.msra.mxu0 0.0
      %1332 = vmatprep.subr.mxu0 0.0
      %1333 = vmatpush1.msra.mxu0 0.0
      %1334 = vmatprep.subr.mxu0 0.0
      %1335 = vmatpush1.msra.mxu0 0.0
      %1336 = vmatprep.subr.mxu0 0.0
      %1337 = vmatpush1.msra.mxu0 0.0
      %1338 = vmatprep.subr.mxu0 0.0
      %1339 = vmatpush1.msra.mxu0 0.0
      %1340 = vmatprep.subr.mxu0 0.0
      %1341 = vmatpush1.msra.mxu0 0.0
      %1342 = vmatprep.subr.mxu0 0.0
      %1343 = vmatpush1.msra.mxu0 0.0
      %1344 = vmatprep.subr.mxu0 0.0
      %1345 = vmatpush1.msra.mxu0 0.0
      %1346 = vmatprep.subr.mxu0 0.0
      %1347 = vmatpush1.msra.mxu0 0.0
      %1348 = vmatprep.subr.mxu0 0.0
      %1349 = vmatpush1.msra.mxu0 0.0
      %1350 = vmatprep.subr.mxu0 0.0
      %1351 = vmatpush1.msra.mxu0 0.0
      %1352 = vmatprep.subr.mxu0 0.0
      %1353 = vmatpush1.msra.mxu0 0.0
      %1354 = vmatprep.subr.mxu0 0.0
      %1355 = vmatpush1.msra.mxu0 0.0
      %1356 = vmatprep.subr.mxu0 0.0
      %1357 = vmatpush1.msra.mxu0 0.0
      %1358 = vmatprep.subr.mxu0 0.0
      %1359 = vmatpush1.msra.mxu0 0.0
      %1360 = vmatprep.subr.mxu0 0.0
      %1361 = vmatpush1.msra.mxu0 0.0
      %1362 = vmatprep.subr.mxu0 0.0
      %1363 = vmatpush1.msra.mxu0 0.0
      %1364 = vmatprep.subr.mxu0 0.0
      %1365 = vmatpush1.msra.mxu0 0.0
      %1366 = vmatprep.subr.mxu0 0.0
      %1367 = vmatpush1.msra.mxu0 0.0
      %1368 = vmatprep.subr.mxu0 0.0
      %1369 = vmatpush1.msra.mxu0 0.0
      %1370 = vmatprep.subr.mxu0 0.0
      %1371 = vmatpush1.msra.mxu0 0.0
      %1372 = vmatprep.subr.mxu0 0.0
      %1373 = vmatpush1.msra.mxu0 0.0
      %1374 = vmatprep.subr.mxu0 0.0
      %1375 = vmatpush1.msra.mxu0 0.0
      %1376 = vmatprep.mubr.f32.mxu0 0.0
      %1377 = vmatmul.mubr.f32.gmra.mrb[0].mxu0 %v1310
      %v1378 = vpop.f32.mrb[0].mxu0
      %v1379 = vadd.f32 0.0, %v1378
      %v1380 = vpop.f32.mrb[0].mxu0
      %1381 = vdwg.mxu0
      %v1382 = vrot.slane %v1231, 2
      %1383 = vrot.lane.b32.xlu0 %v1382, 64
      %v1384 = vpop.permute.xlu0 %1383
      %v1385 = vsel %vm510, %v1384, 0
      %1387 = vmatprep.subr.mxu0 0.0
      %1388 = vmatpush1.msra.mxu0 %v663
      %1389 = vmatprep.subr.mxu0 0.0
      %1390 = vmatpush1.msra.mxu0 %v664
      %1391 = vmatprep.subr.mxu0 0.0
      %1392 = vmatpush1.msra.mxu0 %v665
      %1393 = vmatprep.subr.mxu0 0.0
      %1394 = vmatpush1.msra.mxu0 %v666
      %1395 = vmatprep.subr.mxu0 0.0
      %1396 = vmatpush1.msra.mxu0 0.0
      %1397 = vmatprep.subr.mxu0 0.0
      %1398 = vmatpush1.msra.mxu0 0.0
      %1399 = vmatprep.subr.mxu0 0.0
      %1400 = vmatpush1.msra.mxu0 0.0
      %1401 = vmatprep.subr.mxu0 0.0
      %1402 = vmatpush1.msra.mxu0 0.0
      %1403 = vmatprep.subr.mxu0 0.0
      %1404 = vmatpush1.msra.mxu0 0.0
      %1405 = vmatprep.subr.mxu0 0.0
      %1406 = vmatpush1.msra.mxu0 0.0
      %1407 = vmatprep.subr.mxu0 0.0
      %1408 = vmatpush1.msra.mxu0 0.0
      %1409 = vmatprep.subr.mxu0 0.0
      %1410 = vmatpush1.msra.mxu0 0.0
      %1411 = vmatprep.subr.mxu0 0.0
      %1412 = vmatpush1.msra.mxu0 0.0
      %1413 = vmatprep.subr.mxu0 0.0
      %1414 = vmatpush1.msra.mxu0 0.0
      %1415 = vmatprep.subr.mxu0 0.0
      %1416 = vmatpush1.msra.mxu0 0.0
      %1417 = vmatprep.subr.mxu0 0.0
      %1418 = vmatpush1.msra.mxu0 0.0
      %1419 = vmatprep.subr.mxu0 0.0
      %1420 = vmatpush1.msra.mxu0 0.0
      %1421 = vmatprep.subr.mxu0 0.0
      %1422 = vmatpush1.msra.mxu0 0.0
      %1423 = vmatprep.subr.mxu0 0.0
      %1424 = vmatpush1.msra.mxu0 0.0
      %1425 = vmatprep.subr.mxu0 0.0
      %1426 = vmatpush1.msra.mxu0 0.0
      %1427 = vmatprep.subr.mxu0 0.0
      %1428 = vmatpush1.msra.mxu0 0.0
      %1429 = vmatprep.subr.mxu0 0.0
      %1430 = vmatpush1.msra.mxu0 0.0
      %1431 = vmatprep.subr.mxu0 0.0
      %1432 = vmatpush1.msra.mxu0 0.0
      %1433 = vmatprep.subr.mxu0 0.0
      %1434 = vmatpush1.msra.mxu0 0.0
      %1435 = vmatprep.subr.mxu0 0.0
      %1436 = vmatpush1.msra.mxu0 0.0
      %1437 = vmatprep.subr.mxu0 0.0
      %1438 = vmatpush1.msra.mxu0 0.0
      %1439 = vmatprep.subr.mxu0 0.0
      %1440 = vmatpush1.msra.mxu0 0.0
      %1441 = vmatprep.subr.mxu0 0.0
      %1442 = vmatpush1.msra.mxu0 0.0
      %1443 = vmatprep.subr.mxu0 0.0
      %1444 = vmatpush1.msra.mxu0 0.0
      %1445 = vmatprep.subr.mxu0 0.0
      %1446 = vmatpush1.msra.mxu0 0.0
      %1447 = vmatprep.subr.mxu0 0.0
      %1448 = vmatpush1.msra.mxu0 0.0
      %1449 = vmatprep.subr.mxu0 0.0
      %1450 = vmatpush1.msra.mxu0 0.0
      %1451 = vmatprep.mubr.f32.mxu0 0.0
      %1452 = vmatmul.mubr.f32.gmra.mrb[0].mxu0 %v1385
      %v1453 = vpop.f32.mrb[0].mxu0
      %v1454 = vadd.f32 0.0, %v1453
      %v1455 = vpop.f32.mrb[0].mxu0
      %1456 = vdwg.mxu0
      %v1457 = vrot.slane %v1231, 3
      %1458 = vrot.lane.b32.xlu0 %v1457, 64
      %v1459 = vpop.permute.xlu0 %1458
      %v1460 = vsel %vm510, %v1459, 0
      %1462 = vmatprep.subr.mxu0 0.0
      %1463 = vmatpush1.msra.mxu0 %v741
      %1464 = vmatprep.subr.mxu0 0.0
      %1465 = vmatpush1.msra.mxu0 %v742
      %1466 = vmatprep.subr.mxu0 0.0
      %1467 = vmatpush1.msra.mxu0 %v743
      %1468 = vmatprep.subr.mxu0 0.0
      %1469 = vmatpush1.msra.mxu0 %v744
      %1470 = vmatprep.subr.mxu0 0.0
      %1471 = vmatpush1.msra.mxu0 0.0
      %1472 = vmatprep.subr.mxu0 0.0
      %1473 = vmatpush1.msra.mxu0 0.0
      %1474 = vmatprep.subr.mxu0 0.0
      %1475 = vmatpush1.msra.mxu0 0.0
      %1476 = vmatprep.subr.mxu0 0.0
      %1477 = vmatpush1.msra.mxu0 0.0
      %1478 = vmatprep.subr.mxu0 0.0
      %1479 = vmatpush1.msra.mxu0 0.0
      %1480 = vmatprep.subr.mxu0 0.0
      %1481 = vmatpush1.msra.mxu0 0.0
      %1482 = vmatprep.subr.mxu0 0.0
      %1483 = vmatpush1.msra.mxu0 0.0
      %1484 = vmatprep.subr.mxu0 0.0
      %1485 = vmatpush1.msra.mxu0 0.0
      %1486 = vmatprep.subr.mxu0 0.0
      %1487 = vmatpush1.msra.mxu0 0.0
      %1488 = vmatprep.subr.mxu0 0.0
      %1489 = vmatpush1.msra.mxu0 0.0
      %1490 = vmatprep.subr.mxu0 0.0
      %1491 = vmatpush1.msra.mxu0 0.0
      %1492 = vmatprep.subr.mxu0 0.0
      %1493 = vmatpush1.msra.mxu0 0.0
      %1494 = vmatprep.subr.mxu0 0.0
      %1495 = vmatpush1.msra.mxu0 0.0
      %1496 = vmatprep.subr.mxu0 0.0
      %1497 = vmatpush1.msra.mxu0 0.0
      %1498 = vmatprep.subr.mxu0 0.0
      %1499 = vmatpush1.msra.mxu0 0.0
      %1500 = vmatprep.subr.mxu0 0.0
      %1501 = vmatpush1.msra.mxu0 0.0
      %1502 = vmatprep.subr.mxu0 0.0
      %1503 = vmatpush1.msra.mxu0 0.0
      %1504 = vmatprep.subr.mxu0 0.0
      %1505 = vmatpush1.msra.mxu0 0.0
      %1506 = vmatprep.subr.mxu0 0.0
      %1507 = vmatpush1.msra.mxu0 0.0
      %1508 = vmatprep.subr.mxu0 0.0
      %1509 = vmatpush1.msra.mxu0 0.0
      %1510 = vmatprep.subr.mxu0 0.0
      %1511 = vmatpush1.msra.mxu0 0.0
      %1512 = vmatprep.subr.mxu0 0.0
      %1513 = vmatpush1.msra.mxu0 0.0
      %1514 = vmatprep.subr.mxu0 0.0
      %1515 = vmatpush1.msra.mxu0 0.0
      %1516 = vmatprep.subr.mxu0 0.0
      %1517 = vmatpush1.msra.mxu0 0.0
      %1518 = vmatprep.subr.mxu0 0.0
      %1519 = vmatpush1.msra.mxu0 0.0
      %1520 = vmatprep.subr.mxu0 0.0
      %1521 = vmatpush1.msra.mxu0 0.0
      %1522 = vmatprep.subr.mxu0 0.0
      %1523 = vmatpush1.msra.mxu0 0.0
      %1524 = vmatprep.subr.mxu0 0.0
      %1525 = vmatpush1.msra.mxu0 0.0
      %1526 = vmatprep.mubr.f32.mxu0 0.0
      %1527 = vmatmul.mubr.f32.gmra.mrb[0].mxu0 %v1460
      %v1528 = vpop.f32.mrb[0].mxu0
      %v1529 = vadd.f32 0.0, %v1528
      %v1530 = vpop.f32.mrb[0].mxu0
      %1531 = vdwg.mxu0
      %v1533 = vrot.slane %v1379, 7
      %v1536 = vrot.slane %v1454, 6
      %v1539 = vrot.slane %v1529, 5
      %v1541 = vsel %vm480, %v1304, %v1533
      %v1542 = vsel %vm482, %v1541, %v1536
      %v1543 = vsel %vm484, %v1542, %v1539
      %v1544 = vrot.slane %v496, 2
      %v1546 = vrot.slane %v499, 1
      %v1548 = vrot.slane %v505, 7
      %v1550 = vsel %vm480, %v1544, %v1546
      %v1551 = vsel %vm482, %v1550, %v502
      %v1552 = vsel %vm484, %v1551, %v1548
      %v1553 = vadd.f32 %v1552, %v1543
      %v1554 = vxor.u32 %v1553, 2147483648
      %v1555 = vmul.f32 %v1554, 1.442695
      %v1556 = vpow.pop %v1555
      %v1557 = vadd.f32 %v1556, 1.0
      %v1558 = vrcp.pop %v1557
      %v1559 = vmul.f32 1.0, %v1558
      %v1560 = vadd.f32 %v1543, %v851
      %1562 = vrot.lane.b32.xlu0 %v1560, 64
      %v1563 = vpop.permute.xlu0 %1562
      %v1565 = vmul.f32 %v1559, %v1563
      %1567 = vrot.lane.b32.xlu0 %v1565, 64
      %v1568 = vpop.permute.xlu0 %1567
      %v1570 = vadd.f32 %v1552, %v1568
      %v1571 = vtanh.pop %v1570
      %v1572 = vsub.f32 %v1231, %v1571
      %1574 = vrot.lane.b32.xlu0 %v1572, 96
      %v1575 = vpop.permute.xlu0 %1574
      %v1577 = vmul.f32 %v1559, %v1575
      %1579 = vrot.lane.b32.xlu0 %v1577, 32
      %v1580 = vpop.permute.xlu0 %1579
      %v1582 = vadd.f32 %v1571, %v1580
      %1584 = vrot.lane.b32.xlu0 %v1582, 64
      %v1585 = vpop.permute.xlu0 %1584
      %v1586 = vsel %vm510, %v1585, 0
      %1588 = vmatprep.subr.mxu0 0.0
      %1589 = vmatpush1.msra.mxu0 %v506
      %1590 = vmatprep.subr.mxu0 0.0
      %1591 = vmatpush1.msra.mxu0 %v507
      %1592 = vmatprep.subr.mxu0 0.0
      %1593 = vmatpush1.msra.mxu0 %v508
      %1594 = vmatprep.subr.mxu0 0.0
      %1595 = vmatpush1.msra.mxu0 %v509
      %1596 = vmatprep.subr.mxu0 0.0
      %1597 = vmatpush1.msra.mxu0 0.0
      %1598 = vmatprep.subr.mxu0 0.0
      %1599 = vmatpush1.msra.mxu0 0.0
      %1600 = vmatprep.subr.mxu0 0.0
      %1601 = vmatpush1.msra.mxu0 0.0
      %1602 = vmatprep.subr.mxu0 0.0
      %1603 = vmatpush1.msra.mxu0 0.0
      %1604 = vmatprep.subr.mxu0 0.0
      %1605 = vmatpush1.msra.mxu0 0.0
      %1606 = vmatprep.subr.mxu0 0.0
      %1607 = vmatpush1.msra.mxu0 0.0
      %1608 = vmatprep.subr.mxu0 0.0
      %1609 = vmatpush1.msra.mxu0 0.0
      %1610 = vmatprep.subr.mxu0 0.0
      %1611 = vmatpush1.msra.mxu0 0.0
      %1612 = vmatprep.subr.mxu0 0.0
      %1613 = vmatpush1.msra.mxu0 0.0
      %1614 = vmatprep.subr.mxu0 0.0
      %1615 = vmatpush1.msra.mxu0 0.0
      %1616 = vmatprep.subr.mxu0 0.0
      %1617 = vmatpush1.msra.mxu0 0.0
      %1618 = vmatprep.subr.mxu0 0.0
      %1619 = vmatpush1.msra.mxu0 0.0
      %1620 = vmatprep.subr.mxu0 0.0
      %1621 = vmatpush1.msra.mxu0 0.0
      %1622 = vmatprep.subr.mxu0 0.0
      %1623 = vmatpush1.msra.mxu0 0.0
      %1624 = vmatprep.subr.mxu0 0.0
      %1625 = vmatpush1.msra.mxu0 0.0
      %1626 = vmatprep.subr.mxu0 0.0
      %1627 = vmatpush1.msra.mxu0 0.0
      %1628 = vmatprep.subr.mxu0 0.0
      %1629 = vmatpush1.msra.mxu0 0.0
      %1630 = vmatprep.subr.mxu0 0.0
      %1631 = vmatpush1.msra.mxu0 0.0
      %1632 = vmatprep.subr.mxu0 0.0
      %1633 = vmatpush1.msra.mxu0 0.0
      %1634 = vmatprep.subr.mxu0 0.0
      %1635 = vmatpush1.msra.mxu0 0.0
      %1636 = vmatprep.subr.mxu0 0.0
      %1637 = vmatpush1.msra.mxu0 0.0
      %1638 = vmatprep.subr.mxu0 0.0
      %1639 = vmatpush1.msra.mxu0 0.0
      %1640 = vmatprep.subr.mxu0 0.0
      %1641 = vmatpush1.msra.mxu0 0.0
      %1642 = vmatprep.subr.mxu0 0.0
      %1643 = vmatpush1.msra.mxu0 0.0
      %1644 = vmatprep.subr.mxu0 0.0
      %1645 = vmatpush1.msra.mxu0 0.0
      %1646 = vmatprep.subr.mxu0 0.0
      %1647 = vmatpush1.msra.mxu0 0.0
      %1648 = vmatprep.subr.mxu0 0.0
      %1649 = vmatpush1.msra.mxu0 0.0
      %1650 = vmatprep.subr.mxu0 0.0
      %1651 = vmatpush1.msra.mxu0 0.0
      %1652 = vmatprep.mubr.f32.mxu0 0.0
      %1653 = vmatmul.mubr.f32.gmra.mrb[0].mxu0 %v1586
      %v1654 = vpop.f32.mrb[0].mxu0
      %v1655 = vadd.f32 0.0, %v1654
      %v1656 = vpop.f32.mrb[0].mxu0
      %1657 = vdwg.mxu0
      %v1658 = vrot.slane %v1582, 1
      %1659 = vrot.lane.b32.xlu0 %v1658, 64
      %v1660 = vpop.permute.xlu0 %1659
      %v1661 = vsel %vm510, %v1660, 0
      %1663 = vmatprep.subr.mxu0 0.0
      %1664 = vmatpush1.msra.mxu0 %v585
      %1665 = vmatprep.subr.mxu0 0.0
      %1666 = vmatpush1.msra.mxu0 %v586
      %1667 = vmatprep.subr.mxu0 0.0
      %1668 = vmatpush1.msra.mxu0 %v587
      %1669 = vmatprep.subr.mxu0 0.0
      %1670 = vmatpush1.msra.mxu0 %v588
      %1671 = vmatprep.subr.mxu0 0.0
      %1672 = vmatpush1.msra.mxu0 0.0
      %1673 = vmatprep.subr.mxu0 0.0
      %1674 = vmatpush1.msra.mxu0 0.0
      %1675 = vmatprep.subr.mxu0 0.0
      %1676 = vmatpush1.msra.mxu0 0.0
      %1677 = vmatprep.subr.mxu0 0.0
      %1678 = vmatpush1.msra.mxu0 0.0
      %1679 = vmatprep.subr.mxu0 0.0
      %1680 = vmatpush1.msra.mxu0 0.0
      %1681 = vmatprep.subr.mxu0 0.0
      %1682 = vmatpush1.msra.mxu0 0.0
      %1683 = vmatprep.subr.mxu0 0.0
      %1684 = vmatpush1.msra.mxu0 0.0
      %1685 = vmatprep.subr.mxu0 0.0
      %1686 = vmatpush1.msra.mxu0 0.0
      %1687 = vmatprep.subr.mxu0 0.0
      %1688 = vmatpush1.msra.mxu0 0.0
      %1689 = vmatprep.subr.mxu0 0.0
      %1690 = vmatpush1.msra.mxu0 0.0
      %1691 = vmatprep.subr.mxu0 0.0
      %1692 = vmatpush1.msra.mxu0 0.0
      %1693 = vmatprep.subr.mxu0 0.0
      %1694 = vmatpush1.msra.mxu0 0.0
      %1695 = vmatprep.subr.mxu0 0.0
      %1696 = vmatpush1.msra.mxu0 0.0
      %1697 = vmatprep.subr.mxu0 0.0
      %1698 = vmatpush1.msra.mxu0 0.0
      %1699 = vmatprep.subr.mxu0 0.0
      %1700 = vmatpush1.msra.mxu0 0.0
      %1701 = vmatprep.subr.mxu0 0.0
      %1702 = vmatpush1.msra.mxu0 0.0
      %1703 = vmatprep.subr.mxu0 0.0
      %1704 = vmatpush1.msra.mxu0 0.0
      %1705 = vmatprep.subr.mxu0 0.0
      %1706 = vmatpush1.msra.mxu0 0.0
      %1707 = vmatprep.subr.mxu0 0.0
      %1708 = vmatpush1.msra.mxu0 0.0
      %1709 = vmatprep.subr.mxu0 0.0
      %1710 = vmatpush1.msra.mxu0 0.0
      %1711 = vmatprep.subr.mxu0 0.0
      %1712 = vmatpush1.msra.mxu0 0.0
      %1713 = vmatprep.subr.mxu0 0.0
      %1714 = vmatpush1.msra.mxu0 0.0
      %1715 = vmatprep.subr.mxu0 0.0
      %1716 = vmatpush1.msra.mxu0 0.0
      %1717 = vmatprep.subr.mxu0 0.0
      %1718 = vmatpush1.msra.mxu0 0.0
      %1719 = vmatprep.subr.mxu0 0.0
      %1720 = vmatpush1.msra.mxu0 0.0
      %1721 = vmatprep.subr.mxu0 0.0
      %1722 = vmatpush1.msra.mxu0 0.0
      %1723 = vmatprep.subr.mxu0 0.0
      %1724 = vmatpush1.msra.mxu0 0.0
      %1725 = vmatprep.subr.mxu0 0.0
      %1726 = vmatpush1.msra.mxu0 0.0
      %1727 = vmatprep.mubr.f32.mxu0 0.0
      %1728 = vmatmul.mubr.f32.gmra.mrb[0].mxu0 %v1661
      %v1729 = vpop.f32.mrb[0].mxu0
      %v1730 = vadd.f32 0.0, %v1729
      %v1731 = vpop.f32.mrb[0].mxu0
      %1732 = vdwg.mxu0
      %v1733 = vrot.slane %v1582, 2
      %1734 = vrot.lane.b32.xlu0 %v1733, 64
      %v1735 = vpop.permute.xlu0 %1734
      %v1736 = vsel %vm510, %v1735, 0
      %1738 = vmatprep.subr.mxu0 0.0
      %1739 = vmatpush1.msra.mxu0 %v663
      %1740 = vmatprep.subr.mxu0 0.0
      %1741 = vmatpush1.msra.mxu0 %v664
      %1742 = vmatprep.subr.mxu0 0.0
      %1743 = vmatpush1.msra.mxu0 %v665
      %1744 = vmatprep.subr.mxu0 0.0
      %1745 = vmatpush1.msra.mxu0 %v666
      %1746 = vmatprep.subr.mxu0 0.0
      %1747 = vmatpush1.msra.mxu0 0.0
      %1748 = vmatprep.subr.mxu0 0.0
      %1749 = vmatpush1.msra.mxu0 0.0
      %1750 = vmatprep.subr.mxu0 0.0
      %1751 = vmatpush1.msra.mxu0 0.0
      %1752 = vmatprep.subr.mxu0 0.0
      %1753 = vmatpush1.msra.mxu0 0.0
      %1754 = vmatprep.subr.mxu0 0.0
      %1755 = vmatpush1.msra.mxu0 0.0
      %1756 = vmatprep.subr.mxu0 0.0
      %1757 = vmatpush1.msra.mxu0 0.0
      %1758 = vmatprep.subr.mxu0 0.0
      %1759 = vmatpush1.msra.mxu0 0.0
      %1760 = vmatprep.subr.mxu0 0.0
      %1761 = vmatpush1.msra.mxu0 0.0
      %1762 = vmatprep.subr.mxu0 0.0
      %1763 = vmatpush1.msra.mxu0 0.0
      %1764 = vmatprep.subr.mxu0 0.0
      %1765 = vmatpush1.msra.mxu0 0.0
      %1766 = vmatprep.subr.mxu0 0.0
      %1767 = vmatpush1.msra.mxu0 0.0
      %1768 = vmatprep.subr.mxu0 0.0
      %1769 = vmatpush1.msra.mxu0 0.0
      %1770 = vmatprep.subr.mxu0 0.0
      %1771 = vmatpush1.msra.mxu0 0.0
      %1772 = vmatprep.subr.mxu0 0.0
      %1773 = vmatpush1.msra.mxu0 0.0
      %1774 = vmatprep.subr.mxu0 0.0
      %1775 = vmatpush1.msra.mxu0 0.0
      %1776 = vmatprep.subr.mxu0 0.0
      %1777 = vmatpush1.msra.mxu0 0.0
      %1778 = vmatprep.subr.mxu0 0.0
      %1779 = vmatpush1.msra.mxu0 0.0
      %1780 = vmatprep.subr.mxu0 0.0
      %1781 = vmatpush1.msra.mxu0 0.0
      %1782 = vmatprep.subr.mxu0 0.0
      %1783 = vmatpush1.msra.mxu0 0.0
      %1784 = vmatprep.subr.mxu0 0.0
      %1785 = vmatpush1.msra.mxu0 0.0
      %1786 = vmatprep.subr.mxu0 0.0
      %1787 = vmatpush1.msra.mxu0 0.0
      %1788 = vmatprep.subr.mxu0 0.0
      %1789 = vmatpush1.msra.mxu0 0.0
      %1790 = vmatprep.subr.mxu0 0.0
      %1791 = vmatpush1.msra.mxu0 0.0
      %1792 = vmatprep.subr.mxu0 0.0
      %1793 = vmatpush1.msra.mxu0 0.0
      %1794 = vmatprep.subr.mxu0 0.0
      %1795 = vmatpush1.msra.mxu0 0.0
      %1796 = vmatprep.subr.mxu0 0.0
      %1797 = vmatpush1.msra.mxu0 0.0
      %1798 = vmatprep.subr.mxu0 0.0
      %1799 = vmatpush1.msra.mxu0 0.0
      %1800 = vmatprep.subr.mxu0 0.0
      %1801 = vmatpush1.msra.mxu0 0.0
      %1802 = vmatprep.mubr.f32.mxu0 0.0
      %1803 = vmatmul.mubr.f32.gmra.mrb[0].mxu0 %v1736
      %v1804 = vpop.f32.mrb[0].mxu0
      %v1805 = vadd.f32 0.0, %v1804
      %v1806 = vpop.f32.mrb[0].mxu0
      %1807 = vdwg.mxu0
      %v1808 = vrot.slane %v1582, 3
      %1809 = vrot.lane.b32.xlu0 %v1808, 64
      %v1810 = vpop.permute.xlu0 %1809
      %v1811 = vsel %vm510, %v1810, 0
      %1813 = vmatprep.subr.mxu0 0.0
      %1814 = vmatpush1.msra.mxu0 %v741
      %1815 = vmatprep.subr.mxu0 0.0
      %1816 = vmatpush1.msra.mxu0 %v742
      %1817 = vmatprep.subr.mxu0 0.0
      %1818 = vmatpush1.msra.mxu0 %v743
      %1819 = vmatprep.subr.mxu0 0.0
      %1820 = vmatpush1.msra.mxu0 %v744
      %1821 = vmatprep.subr.mxu0 0.0
      %1822 = vmatpush1.msra.mxu0 0.0
      %1823 = vmatprep.subr.mxu0 0.0
      %1824 = vmatpush1.msra.mxu0 0.0
      %1825 = vmatprep.subr.mxu0 0.0
      %1826 = vmatpush1.msra.mxu0 0.0
      %1827 = vmatprep.subr.mxu0 0.0
      %1828 = vmatpush1.msra.mxu0 0.0
      %1829 = vmatprep.subr.mxu0 0.0
      %1830 = vmatpush1.msra.mxu0 0.0
      %1831 = vmatprep.subr.mxu0 0.0
      %1832 = vmatpush1.msra.mxu0 0.0
      %1833 = vmatprep.subr.mxu0 0.0
      %1834 = vmatpush1.msra.mxu0 0.0
      %1835 = vmatprep.subr.mxu0 0.0
      %1836 = vmatpush1.msra.mxu0 0.0
      %1837 = vmatprep.subr.mxu0 0.0
      %1838 = vmatpush1.msra.mxu0 0.0
      %1839 = vmatprep.subr.mxu0 0.0
      %1840 = vmatpush1.msra.mxu0 0.0
      %1841 = vmatprep.subr.mxu0 0.0
      %1842 = vmatpush1.msra.mxu0 0.0
      %1843 = vmatprep.subr.mxu0 0.0
      %1844 = vmatpush1.msra.mxu0 0.0
      %1845 = vmatprep.subr.mxu0 0.0
      %1846 = vmatpush1.msra.mxu0 0.0
      %1847 = vmatprep.subr.mxu0 0.0
      %1848 = vmatpush1.msra.mxu0 0.0
      %1849 = vmatprep.subr.mxu0 0.0
      %1850 = vmatpush1.msra.mxu0 0.0
      %1851 = vmatprep.subr.mxu0 0.0
      %1852 = vmatpush1.msra.mxu0 0.0
      %1853 = vmatprep.subr.mxu0 0.0
      %1854 = vmatpush1.msra.mxu0 0.0
      %1855 = vmatprep.subr.mxu0 0.0
      %1856 = vmatpush1.msra.mxu0 0.0
      %1857 = vmatprep.subr.mxu0 0.0
      %1858 = vmatpush1.msra.mxu0 0.0
      %1859 = vmatprep.subr.mxu0 0.0
      %1860 = vmatpush1.msra.mxu0 0.0
      %1861 = vmatprep.subr.mxu0 0.0
      %1862 = vmatpush1.msra.mxu0 0.0
      %1863 = vmatprep.subr.mxu0 0.0
      %1864 = vmatpush1.msra.mxu0 0.0
      %1865 = vmatprep.subr.mxu0 0.0
      %1866 = vmatpush1.msra.mxu0 0.0
      %1867 = vmatprep.subr.mxu0 0.0
      %1868 = vmatpush1.msra.mxu0 0.0
      %1869 = vmatprep.subr.mxu0 0.0
      %1870 = vmatpush1.msra.mxu0 0.0
      %1871 = vmatprep.subr.mxu0 0.0
      %1872 = vmatpush1.msra.mxu0 0.0
      %1873 = vmatprep.subr.mxu0 0.0
      %1874 = vmatpush1.msra.mxu0 0.0
      %1875 = vmatprep.subr.mxu0 0.0
      %1876 = vmatpush1.msra.mxu0 0.0
      %1877 = vmatprep.mubr.f32.mxu0 0.0
      %1878 = vmatmul.mubr.f32.gmra.mrb[0].mxu0 %v1811
      %v1879 = vpop.f32.mrb[0].mxu0
      %v1880 = vadd.f32 0.0, %v1879
      %v1881 = vpop.f32.mrb[0].mxu0
      %1882 = vdwg.mxu0
      %v1884 = vrot.slane %v1730, 7
      %v1887 = vrot.slane %v1805, 6
      %v1890 = vrot.slane %v1880, 5
      %v1892 = vsel %vm480, %v1655, %v1884
      %v1893 = vsel %vm482, %v1892, %v1887
      %v1894 = vsel %vm484, %v1893, %v1890
      %v1895 = vrot.slane %v496, 3
      %v1897 = vrot.slane %v499, 2
      %v1899 = vrot.slane %v502, 1
      %v1901 = vsel %vm480, %v1895, %v1897
      %v1902 = vsel %vm482, %v1901, %v1899
      %v1903 = vsel %vm484, %v1902, %v505
      %v1904 = vadd.f32 %v1903, %v1894
      %v1905 = vxor.u32 %v1904, 2147483648
      %v1906 = vmul.f32 %v1905, 1.442695
      %v1907 = vpow.pop %v1906
      %v1908 = vadd.f32 %v1907, 1.0
      %v1909 = vrcp.pop %v1908
      %v1910 = vmul.f32 1.0, %v1909
      %v1911 = vadd.f32 %v1894, %v851
      %1913 = vrot.lane.b32.xlu0 %v1911, 64
      %v1914 = vpop.permute.xlu0 %1913
      %v1916 = vmul.f32 %v1910, %v1914
      %1918 = vrot.lane.b32.xlu0 %v1916, 64
      %v1919 = vpop.permute.xlu0 %1918
      %v1921 = vadd.f32 %v1903, %v1919
      %v1922 = vtanh.pop %v1921
      %v1923 = vsub.f32 %v1582, %v1922
      %1925 = vrot.lane.b32.xlu0 %v1923, 96
      %v1926 = vpop.permute.xlu0 %1925
      %v1928 = vmul.f32 %v1910, %v1926
      %1930 = vrot.lane.b32.xlu0 %v1928, 32
      %v1931 = vpop.permute.xlu0 %1930
      %v1933 = vadd.f32 %v1922, %v1931
      %v1934 = vrot.slane %v1231, 7
      %v1936 = vrot.slane %v1582, 6
      %v1939 = vrot.slane %v1933, 5
      %v1941 = vsel %vm480, %v879, %v1934
      %v1942 = vsel %vm482, %v1941, %v1936
      %v1943 = vsel %vm484, %v1942, %v1939
      %1945 = vrot.lane.b32.xlu0 %v1943, 64
      %v1946 = vpop.permute.xlu0 %1945
      %s1948 = scalar_lea.vmem [#allocation10], %s494
      %vm1949 = vcmask 257024
      %1950 = vst.msk [vmem:[%s1948] sm:$0xf] %vm1949, %v1946
      %v1952 = vrot.slane %v1582, 7
      %v1954 = vrot.slane %v1933, 6
      %v1956 = vsel %vm480, %v955, %v1231
      %v1957 = vsel %vm482, %v1956, %v1952
      %v1958 = vsel %vm484, %v1957, %v1954
      %1960 = vrot.lane.b32.xlu0 %v1958, 64
      %v1961 = vpop.permute.xlu0 %1960
      %s1963 = scalar_lea.vmem [#allocation10], %s497
      %1964 = vst.msk [vmem:[%s1963] sm:$0xf] %vm1949, %v1961
      %v1967 = vrot.slane %v1933, 7
      %v1969 = vsel %vm480, %v1030, %v1307
      %v1970 = vsel %vm482, %v1969, %v1582
      %v1971 = vsel %vm484, %v1970, %v1967
      %1973 = vrot.lane.b32.xlu0 %v1971, 64
      %v1974 = vpop.permute.xlu0 %1973
      %s1976 = scalar_lea.vmem [#allocation10], %s500
      %1977 = vst.msk [vmem:[%s1976] sm:$0xf] %vm1949, %v1974
      %v1981 = vsel %vm480, %v1105, %v1382
      %v1982 = vsel %vm482, %v1981, %v1658
      %v1983 = vsel %vm484, %v1982, %v1933
      %1985 = vrot.lane.b32.xlu0 %v1983, 64
      %v1986 = vpop.permute.xlu0 %1985
      %s1988 = scalar_lea.vmem [#allocation10], %s503
      %1989 = vst.msk [vmem:[%s1988] sm:$0xf] %vm1949, %v1986
      %1990 = vrot.lane.b32.xlu0 %v1933, 64
      %v1991 = vpop.permute.xlu0 %1990
    $region46: #{nonlearnable_cell_forward.1} parent=1 // loop_footer
      %s492 = sadd.s32 1, %s488
    $region47: #{nonlearnable_cell_forward.1} parent=1 // loop_footer_branch
      %487 = sbr.rel target = $region43
    $region48: #{nonlearnable_cell_forward.1} parent=1 // loop_exit
      _
    %vm1993 = vcmask 257024
    %1994 = vst.msk [vmem:[#allocation3] sm:$0xf] %vm1993, %v493
    %vm1995 = vcmask 253952
    %1996 = vst.msk [vmem:[#allocation11] sm:$0x1] %vm1995, %v493
    %s1997 = scalar_lea.vmem [#allocation11], 1
    %vm1998 = vcmask 254977
    %1999 = vst.msk [vmem:[%s1997 - $0x1] sm:$0x2] %vm1998, %v493
    %s2000 = scalar_lea.vmem [#allocation11], 2
    %vm2001 = vcmask 256002
    %2002 = vst.msk [vmem:[%s2000 - $0x2] sm:$0x4] %vm2001, %v493
    %s2003 = scalar_lea.vmem [#allocation11], 3
    %vm2004 = vcmask 257027
    %2005 = vst.msk [vmem:[%s2003 - $0x3] sm:$0x8] %vm2004, %v493
    // Predicated region
    $region49: #{nonlearnable_cell_forward.1} parent=1 // pred_check
      _
    $region50: #{nonlearnable_cell_forward.1} parent=1 // pred_check_branch
      %2007 = sbr.rel (0) target = $region52
    $region51: #{nonlearnable_cell_forward.1} parent=1 // pred_region
      %s2009 = ssub.s32 512, 512
      %2010 = vsyncadd [#allocation6], %s2009
      %s2011 = sshll.u32 [#allocation10], 4
      %s2012 = int_to_ptr.vmem [resolvable:$true] %s2011
      %2017 = dma.vmem_to_hbm [thread:$0]  %s2012, 512, %s6, [#allocation6], 128, 128, 8
    $region52: #{nonlearnable_cell_forward.1} parent=1 // pred_fallthru
      _
    // Predicated region
    $region53: #{nonlearnable_cell_forward.1} parent=1 // pred_check
      _
    $region54: #{nonlearnable_cell_forward.1} parent=1 // pred_check_branch
      %2019 = sbr.rel (0) target = $region56
    $region55: #{nonlearnable_cell_forward.1} parent=1 // pred_region
      %s2021 = ssub.s32 64, 64
      %2022 = vsyncadd [#allocation12], %s2021
      %s2023 = sshll.u32 [#allocation11], 4
      %s2024 = int_to_ptr.vmem [resolvable:$true] %s2023
      %2029 = dma.vmem_to_hbm [thread:$0]  %s2024, 64, %s7, [#allocation12], 16, 16, 1
    $region56: #{nonlearnable_cell_forward.1} parent=1 // pred_fallthru
      _
    // Predicated region
    $region57: #{nonlearnable_cell_forward.1} parent=1 // pred_check
      _
    $region58: #{nonlearnable_cell_forward.1} parent=1 // pred_check_branch
      %2031 = sbr.rel (0) target = $region60
    $region59: #{nonlearnable_cell_forward.1} parent=1 // pred_region
      %2032 = dma.done [#allocation6], 512
    $region60: #{nonlearnable_cell_forward.1} parent=1 // pred_fallthru
      _
    // Predicated region
    $region61: #{nonlearnable_cell_forward.1} parent=1 // pred_check
      _
    $region62: #{nonlearnable_cell_forward.1} parent=1 // pred_check_branch
      %2034 = sbr.rel (0) target = $region64
    $region63: #{nonlearnable_cell_forward.1} parent=1 // pred_region
      %2035 = dma.done [#allocation12], 64
    $region64: #{nonlearnable_cell_forward.1} parent=1 // pred_fallthru
      _
    %2036 = vsyncpa [#allocation5], 1
    %2037 = vsyncpa [#allocation8], 1
    %2038 = vsyncpa [#allocation6], 1
    %2039 = vsyncpa [#allocation12], 1

</llo_original>
